<compile_context>
chip_gen: v6e
topology: v6e:2x2x1
jax: 0.10.0
libtpu: 0.0.40
codegen_flags: <defaults>
</compile_context>

<pallas_src>
import jax
import jax.numpy as jnp
import numpy as np
from jax.experimental import pallas as pl
from jax.experimental.pallas import tpu as pltpu


_LANE = 128
_VPU_CIN_MAX = 64                 # below this, do the 1x1 conv as VPU FMAs (skip the MXU)
_VMEM_LIMIT = 48 * 1024 * 1024    # > 32 MiB scoped default, < v7x 64 MiB physical


def _round_up(x, m):
    return ((x + m - 1) // m) * m


def _upsample_matrix(in_size, scale):
    """(out, in) interpolation matrix matching nn.Upsample(mode='bilinear', align_corners=False)."""
    out_size = in_size * scale
    o = np.arange(out_size, dtype=np.float64)
    src = np.maximum((o + 0.5) / scale - 0.5, 0.0)
    i0 = np.minimum(np.floor(src).astype(np.int64), in_size - 1)
    i1 = np.minimum(i0 + 1, in_size - 1)
    frac = src - i0
    a = np.zeros((out_size, in_size), dtype=np.float32)
    a[np.arange(out_size), i0] += 1.0 - frac
    a[np.arange(out_size), i1] += frac
    return a


def _bilinear_upsample(x, scale):
    # TODO(synk): bilinear upsample stays as (separable-matmul) JAX glue; it only touches the
    # small low-res inputs so it is off the HBM-critical path of the kernels below.
    ah = jnp.asarray(_upsample_matrix(x.shape[2], scale))
    aw = jnp.asarray(_upsample_matrix(x.shape[3], scale))
    return jnp.einsum("Hh,nchw,Ww->ncHW", ah, x, aw)


def _conv1x1_apply(w, x):
    """1x1 conv on a lane-dense tile: (Cout, Cin) @ (Cin, L) -> (Cout, L), f32 accumulate."""
    cout, cin = w.shape
    if cin <= _VPU_CIN_MAX:
        # Tiny contraction dim: VPU broadcast-FMAs instead of a near-empty MXU matmul.
        acc = w[:, 0:1] * x[0:1, :]
        for i in range(1, cin):
            acc = acc + w[:, i:i + 1] * x[i:i + 1, :]
        return acc.astype(jnp.float32)
    return jnp.dot(w, x, preferred_element_type=jnp.float32)


def sff_forward(d3, d2, d1, w1, b1, w2, b2, w3, b3, fc_w, fc_b, *, tile_hw=2048):
    """d1: (N, Cin, H, W); d2: (N, 2Cin, H/2, W/2); d3: (N, 4Cin, H/4, W/4).
    w_i: (Cout, Cin_i), b_i: (Cout,).  fc_w: (3Cout, 3Cout), fc_b: (3Cout,)."""
    n, c1, h, w = d1.shape
    cout = w1.shape[0]
    c2, c3 = w2.shape[1], w3.shape[1]
    ccat = 3 * cout
    hw = h * w

    # --- glue: upsample to full res, flatten spatial onto lanes, pad to the tile size ---
    u2 = _bilinear_upsample(d2, 2)
    u3 = _bilinear_upsample(d3, 4)

    tile = _round_up(min(int(tile_hw), _round_up(hw, _LANE)), _LANE)
    hw_pad = _round_up(hw, tile)
    n_t = hw_pad // tile

    def flat(x):
        xf = x.reshape(n, x.shape[1], hw)
        if hw_pad != hw:
            xf = jnp.pad(xf, ((0, 0), (0, 0), (0, hw_pad - hw)))
        return xf

    d1f, u2f, u3f = flat(d1), flat(u2), flat(u3)
    b_cat = jnp.concatenate([b1, b2, b3]).reshape(ccat, 1).astype(jnp.float32)
    fcb_col = fc_b.reshape(ccat, 1).astype(jnp.float32)
    inv_hw = 1.0 / float(hw)

    # -------- stage 1: fused 1x1 convs + concat + masked global pools + fc + sigmoid gate --------
    def stage1_kernel(d1_ref, u2_ref, u3_ref, w1_ref, w2_ref, w3_ref,
                      bcat_ref, fcw_ref, fcb_ref, cat_ref, gate_ref,
                      max_acc, sum_acc):
        t = pl.program_id(1)

        @pl.when(t == 0)
        def _():
            max_acc[...] = jnp.full(max_acc.shape, -jnp.inf, max_acc.dtype)
            sum_acc[...] = jnp.zeros(sum_acc.shape, sum_acc.dtype)

        x1 = _conv1x1_apply(w1_ref[...], d1_ref[0])
        x2 = _conv1x1_apply(w2_ref[...], u2_ref[0])
        x3 = _conv1x1_apply(w3_ref[...], u3_ref[0])
        cat = jnp.concatenate([x1, x2, x3], axis=0) + bcat_ref[...]       # (3Cout, tile)
        cat_ref[0] = cat.astype(cat_ref.dtype)

        # Global max / sum pools, masking the padded tail lanes.
        lane_idx = jax.lax.broadcasted_iota(jnp.int32, cat.shape, 1)
        valid = (t * tile + lane_idx) < hw
        max_acc[...] = jnp.maximum(
            max_acc[...],
            jnp.max(jnp.where(valid, cat, -jnp.inf), axis=-1, keepdims=True))
        sum_acc[...] = sum_acc[...] + jnp.sum(
            jnp.where(valid, cat, 0.0), axis=-1, keepdims=True)

        @pl.when(t == n_t - 1)
        def _():
            mx = max_acc[...]
            av = sum_acc[...] * inv_hw
            fcw = fcw_ref[...]
            hvec = (jnp.dot(fcw, mx, preferred_element_type=jnp.float32) + fcb_ref[...] +
                    jnp.dot(fcw, av, preferred_element_type=jnp.float32) + fcb_ref[...])
            gate_ref[0] = jax.nn.sigmoid(hvec).astype(gate_ref.dtype)

    cat_pad, gate = pl.pallas_call(
        stage1_kernel,
        out_shape=(jax.ShapeDtypeStruct((n, ccat, hw_pad), jnp.float32),
                   jax.ShapeDtypeStruct((n, ccat, 1), jnp.float32)),
        grid=(n, n_t),
        in_specs=[
            pl.BlockSpec((1, c1, tile), lambda b, t: (b, 0, t)),
            pl.BlockSpec((1, c2, tile), lambda b, t: (b, 0, t)),
            pl.BlockSpec((1, c3, tile), lambda b, t: (b, 0, t)),
            pl.BlockSpec((cout, c1), lambda b, t: (0, 0)),
            pl.BlockSpec((cout, c2), lambda b, t: (0, 0)),
            pl.BlockSpec((cout, c3), lambda b, t: (0, 0)),
            pl.BlockSpec((ccat, 1), lambda b, t: (0, 0)),
            pl.BlockSpec((ccat, ccat), lambda b, t: (0, 0)),
            pl.BlockSpec((ccat, 1), lambda b, t: (0, 0)),
        ],
        out_specs=(
            pl.BlockSpec((1, ccat, tile), lambda b, t: (b, 0, t)),
            pl.BlockSpec((1, ccat, 1), lambda b, t: (b, 0, 0)),
        ),
        scratch_shapes=[pltpu.VMEM((ccat, 1), jnp.float32),
                        pltpu.VMEM((ccat, 1), jnp.float32)],
        compiler_params=pltpu.CompilerParams(
            dimension_semantics=("parallel", "arbitrary"),
            vmem_limit_bytes=_VMEM_LIMIT),
    )(d1f, u2f, u3f, w1, w2, w3, b_cat, fc_w, fcb_col)

    # -------- stage 2: out = sigmoid(h) * cat (lane-dense broadcast over spatial tiles) --------
    def gate_kernel(cat_ref, gate_ref, o_ref):
        o_ref[0] = cat_ref[0] * gate_ref[0]

    out_pad = pl.pallas_call(
        gate_kernel,
        out_shape=jax.ShapeDtypeStruct((n, ccat, hw_pad), jnp.float32),
        grid=(n, n_t),
        in_specs=[
            pl.BlockSpec((1, ccat, tile), lambda b, t: (b, 0, t)),
            pl.BlockSpec((1, ccat, 1), lambda b, t: (b, 0, 0)),
        ],
        out_specs=pl.BlockSpec((1, ccat, tile), lambda b, t: (b, 0, t)),
        compiler_params=pltpu.CompilerParams(
            dimension_semantics=("parallel", "parallel"),
            vmem_limit_bytes=_VMEM_LIMIT),
    )(cat_pad, gate)

    return out_pad[:, :, :hw].reshape(n, ccat, h, w)


def sff_reference(d3, d2, d1, w1, b1, w2, b2, w3, b3, fc_w, fc_b):
    """Pure-JAX reference matching the PyTorch SFF module (NCHW)."""
    u2 = _bilinear_upsample(d2, 2)
    u3 = _bilinear_upsample(d3, 4)

    def conv1x1(x, wt, bs):
        return jnp.einsum("oi,nihw->nohw", wt, x) + bs[None, :, None, None]

    cat = jnp.concatenate([conv1x1(d1, w1, b1),
                           conv1x1(u2, w2, b2),
                           conv1x1(u3, w3, b3)], axis=1)
    mx = jnp.max(cat, axis=(2, 3), keepdims=True)
    av = jnp.mean(cat, axis=(2, 3), keepdims=True)
    hvec = conv1x1(mx, fc_w, fc_b) + conv1x1(av, fc_w, fc_b)
    return jax.nn.sigmoid(hvec) * cat


if __name__ == "__main__":
    key = jax.random.PRNGKey(0)
    ks = jax.random.split(key, 11)

    N, CIN, COUT, H, W = 2, 4, 16, 16, 16
    d1 = jax.random.normal(ks[0], (N, CIN, H, W), jnp.float32)
    d2 = jax.random.normal(ks[1], (N, 2 * CIN, H // 2, W // 2), jnp.float32)
    d3 = jax.random.normal(ks[2], (N, 4 * CIN, H // 4, W // 4), jnp.float32)

    def uinit(k, shape, fan_in):
        bound = 1.0 / np.sqrt(fan_in)
        return jax.random.uniform(k, shape, jnp.float32, -bound, bound)

    w1 = uinit(ks[3], (COUT, CIN), CIN)
    b1 = uinit(ks[4], (COUT,), CIN)
    w2 = uinit(ks[5], (COUT, 2 * CIN), 2 * CIN)
    b2 = uinit(ks[6], (COUT,), 2 * CIN)
    w3 = uinit(ks[7], (COUT, 4 * CIN), 4 * CIN)
    b3 = uinit(ks[8], (COUT,), 4 * CIN)
    fc_w = uinit(ks[9], (3 * COUT, 3 * COUT), 3 * COUT)
    fc_b = uinit(ks[10], (3 * COUT,), 3 * COUT)

    out = sff_forward(d3, d2, d1, w1, b1, w2, b2, w3, b3, fc_w, fc_b)
    out = jax.block_until_ready(out)

    ref = sff_reference(d3, d2, d1, w1, b1, w2, b2, w3, b3, fc_w, fc_b)
    np.testing.assert_allclose(np.asarray(out), np.asarray(ref), rtol=1e-4, atol=1e-5)
    print("KERNEL_OK")
</pallas_src>

<mosaic_0001>
module attributes {stable_mosaic.version = 11 : i64} {
  func.func @stage1_kernel(%arg0: i32, %arg1: i32, %arg2: memref<1x4x256xf32, #tpu.memory_space<vmem>>, %arg3: memref<1x8x256xf32, #tpu.memory_space<vmem>>, %arg4: memref<1x16x256xf32, #tpu.memory_space<vmem>>, %arg5: memref<16x4xf32, #tpu.memory_space<vmem>>, %arg6: memref<16x8xf32, #tpu.memory_space<vmem>>, %arg7: memref<16x16xf32, #tpu.memory_space<vmem>>, %arg8: memref<48x1xf32, #tpu.memory_space<vmem>>, %arg9: memref<48x48xf32, #tpu.memory_space<vmem>>, %arg10: memref<48x1xf32, #tpu.memory_space<vmem>>, %arg11: memref<1x48x256xf32, #tpu.memory_space<vmem>>, %arg12: memref<1x48x1xf32, #tpu.memory_space<vmem>>, %arg13: memref<48x1xf32, #tpu.memory_space<vmem>>, %arg14: memref<48x1xf32, #tpu.memory_space<vmem>>) attributes {dimension_semantics = [#tpu.dimension_semantics<parallel>, #tpu.dimension_semantics<arbitrary>], iteration_bounds = array<i64: 2, 1>, scalar_prefetch = 0 : i64, scratch_operands = 2 : i64, tpu.core_type = #tpu.core_type<tc>, window_params = [{transform_indices = @transform_0, window_bounds = array<i64: 1, 4, 256>}, {transform_indices = @transform_1, window_bounds = array<i64: 1, 8, 256>}, {transform_indices = @transform_2, window_bounds = array<i64: 1, 16, 256>}, {pipeline_mode = #tpu.pipeline_mode<synchronous>, transform_indices = @transform_3, window_bounds = array<i64: 16, 4>}, {pipeline_mode = #tpu.pipeline_mode<synchronous>, transform_indices = @transform_4, window_bounds = array<i64: 16, 8>}, {pipeline_mode = #tpu.pipeline_mode<synchronous>, transform_indices = @transform_5, window_bounds = array<i64: 16, 16>}, {pipeline_mode = #tpu.pipeline_mode<synchronous>, transform_indices = @transform_6, window_bounds = array<i64: 48, 1>}, {pipeline_mode = #tpu.pipeline_mode<synchronous>, transform_indices = @transform_7, window_bounds = array<i64: 48, 48>}, {pipeline_mode = #tpu.pipeline_mode<synchronous>, transform_indices = @transform_8, window_bounds = array<i64: 48, 1>}, {transform_indices = @transform_9, window_bounds = array<i64: 1, 48, 256>}, {transform_indices = @transform_10, window_bounds = array<i64: 1, 48, 1>}]} {
    %c0_i32 = arith.constant 0 : i32
    %0 = arith.cmpi eq, %arg1, %c0_i32 : i32
    %1 = arith.extui %0 : i1 to i32
    %c0_i32_0 = arith.constant 0 : i32
    %2 = arith.cmpi ne, %1, %c0_i32_0 : i32
    scf.if %2 {
      %cst_34 = arith.constant 0xFF800000 : f32
      %207 = vector.broadcast %cst_34 : f32 to vector<48x1xf32>
      %c0_35 = arith.constant 0 : index
      %c0_36 = arith.constant 0 : index
      %208 = vector.load %arg13[%c0_35, %c0_36] : memref<48x1xf32, #tpu.memory_space<vmem>>, vector<48x1xf32>
      tpu.vector_store %arg13[%c0_35, %c0_36], %207 {strides = array<i32>} : memref<48x1xf32, #tpu.memory_space<vmem>>, vector<48x1xf32>,
      %cst_37 = arith.constant 0.000000e+00 : f32
      %209 = vector.broadcast %cst_37 : f32 to vector<48x1xf32>
      %c0_38 = arith.constant 0 : index
      %c0_39 = arith.constant 0 : index
      %210 = vector.load %arg14[%c0_38, %c0_39] : memref<48x1xf32, #tpu.memory_space<vmem>>, vector<48x1xf32>
      tpu.vector_store %arg14[%c0_38, %c0_39], %209 {strides = array<i32>} : memref<48x1xf32, #tpu.memory_space<vmem>>, vector<48x1xf32>,
    } else {
    }
    %c0 = arith.constant 0 : index
    %c0_1 = arith.constant 0 : index
    %3 = vector.load %arg5[%c0, %c0_1] : memref<16x4xf32, #tpu.memory_space<vmem>>, vector<16x4xf32>
    %c0_2 = arith.constant 0 : index
    %c0_3 = arith.constant 0 : index
    %c0_4 = arith.constant 0 : index
    %4 = vector.load %arg2[%c0_2, %c0_3, %c0_4] : memref<1x4x256xf32, #tpu.memory_space<vmem>>, vector<1x4x256xf32>
    %5 = vector.shape_cast %4 : vector<1x4x256xf32> to vector<4x256xf32>
    %6 = vector.extract_strided_slice %3 {offsets = [0, 0], sizes = [16, 1], strides = [1, 1]} : vector<16x4xf32> to vector<16x1xf32>
    %7 = vector.extract_strided_slice %5 {offsets = [0, 0], sizes = [1, 256], strides = [1, 1]} : vector<4x256xf32> to vector<1x256xf32>
    %8 = vector.broadcast %6 : vector<16x1xf32> to vector<16x256xf32>
    %9 = vector.broadcast %7 : vector<1x256xf32> to vector<16x256xf32>
    %10 = arith.mulf %8, %9 : vector<16x256xf32>
    %11 = vector.extract_strided_slice %3 {offsets = [0, 1], sizes = [16, 1], strides = [1, 1]} : vector<16x4xf32> to vector<16x1xf32>
    %12 = vector.extract_strided_slice %5 {offsets = [1, 0], sizes = [1, 256], strides = [1, 1]} : vector<4x256xf32> to vector<1x256xf32>
    %13 = vector.broadcast %11 : vector<16x1xf32> to vector<16x256xf32>
    %14 = vector.broadcast %12 : vector<1x256xf32> to vector<16x256xf32>
    %15 = arith.mulf %13, %14 : vector<16x256xf32>
    %16 = arith.addf %10, %15 : vector<16x256xf32>
    %17 = vector.extract_strided_slice %3 {offsets = [0, 2], sizes = [16, 1], strides = [1, 1]} : vector<16x4xf32> to vector<16x1xf32>
    %18 = vector.extract_strided_slice %5 {offsets = [2, 0], sizes = [1, 256], strides = [1, 1]} : vector<4x256xf32> to vector<1x256xf32>
    %19 = vector.broadcast %17 : vector<16x1xf32> to vector<16x256xf32>
    %20 = vector.broadcast %18 : vector<1x256xf32> to vector<16x256xf32>
    %21 = arith.mulf %19, %20 : vector<16x256xf32>
    %22 = arith.addf %16, %21 : vector<16x256xf32>
    %23 = vector.extract_strided_slice %3 {offsets = [0, 3], sizes = [16, 1], strides = [1, 1]} : vector<16x4xf32> to vector<16x1xf32>
    %24 = vector.extract_strided_slice %5 {offsets = [3, 0], sizes = [1, 256], strides = [1, 1]} : vector<4x256xf32> to vector<1x256xf32>
    %25 = vector.broadcast %23 : vector<16x1xf32> to vector<16x256xf32>
    %26 = vector.broadcast %24 : vector<1x256xf32> to vector<16x256xf32>
    %27 = arith.mulf %25, %26 : vector<16x256xf32>
    %28 = arith.addf %22, %27 : vector<16x256xf32>
    %c0_5 = arith.constant 0 : index
    %c0_6 = arith.constant 0 : index
    %29 = vector.load %arg6[%c0_5, %c0_6] : memref<16x8xf32, #tpu.memory_space<vmem>>, vector<16x8xf32>
    %c0_7 = arith.constant 0 : index
    %c0_8 = arith.constant 0 : index
    %c0_9 = arith.constant 0 : index
    %30 = vector.load %arg3[%c0_7, %c0_8, %c0_9] : memref<1x8x256xf32, #tpu.memory_space<vmem>>, vector<1x8x256xf32>
    %31 = vector.shape_cast %30 : vector<1x8x256xf32> to vector<8x256xf32>
    %32 = vector.extract_strided_slice %29 {offsets = [0, 0], sizes = [16, 1], strides = [1, 1]} : vector<16x8xf32> to vector<16x1xf32>
    %33 = vector.extract_strided_slice %31 {offsets = [0, 0], sizes = [1, 256], strides = [1, 1]} : vector<8x256xf32> to vector<1x256xf32>
    %34 = vector.broadcast %32 : vector<16x1xf32> to vector<16x256xf32>
    %35 = vector.broadcast %33 : vector<1x256xf32> to vector<16x256xf32>
    %36 = arith.mulf %34, %35 : vector<16x256xf32>
    %37 = vector.extract_strided_slice %29 {offsets = [0, 1], sizes = [16, 1], strides = [1, 1]} : vector<16x8xf32> to vector<16x1xf32>
    %38 = vector.extract_strided_slice %31 {offsets = [1, 0], sizes = [1, 256], strides = [1, 1]} : vector<8x256xf32> to vector<1x256xf32>
    %39 = vector.broadcast %37 : vector<16x1xf32> to vector<16x256xf32>
    %40 = vector.broadcast %38 : vector<1x256xf32> to vector<16x256xf32>
    %41 = arith.mulf %39, %40 : vector<16x256xf32>
    %42 = arith.addf %36, %41 : vector<16x256xf32>
    %43 = vector.extract_strided_slice %29 {offsets = [0, 2], sizes = [16, 1], strides = [1, 1]} : vector<16x8xf32> to vector<16x1xf32>
    %44 = vector.extract_strided_slice %31 {offsets = [2, 0], sizes = [1, 256], strides = [1, 1]} : vector<8x256xf32> to vector<1x256xf32>
    %45 = vector.broadcast %43 : vector<16x1xf32> to vector<16x256xf32>
    %46 = vector.broadcast %44 : vector<1x256xf32> to vector<16x256xf32>
    %47 = arith.mulf %45, %46 : vector<16x256xf32>
    %48 = arith.addf %42, %47 : vector<16x256xf32>
    %49 = vector.extract_strided_slice %29 {offsets = [0, 3], sizes = [16, 1], strides = [1, 1]} : vector<16x8xf32> to vector<16x1xf32>
    %50 = vector.extract_strided_slice %31 {offsets = [3, 0], sizes = [1, 256], strides = [1, 1]} : vector<8x256xf32> to vector<1x256xf32>
    %51 = vector.broadcast %49 : vector<16x1xf32> to vector<16x256xf32>
    %52 = vector.broadcast %50 : vector<1x256xf32> to vector<16x256xf32>
    %53 = arith.mulf %51, %52 : vector<16x256xf32>
    %54 = arith.addf %48, %53 : vector<16x256xf32>
    %55 = vector.extract_strided_slice %29 {offsets = [0, 4], sizes = [16, 1], strides = [1, 1]} : vector<16x8xf32> to vector<16x1xf32>
    %56 = vector.extract_strided_slice %31 {offsets = [4, 0], sizes = [1, 256], strides = [1, 1]} : vector<8x256xf32> to vector<1x256xf32>
    %57 = vector.broadcast %55 : vector<16x1xf32> to vector<16x256xf32>
    %58 = vector.broadcast %56 : vector<1x256xf32> to vector<16x256xf32>
    %59 = arith.mulf %57, %58 : vector<16x256xf32>
    %60 = arith.addf %54, %59 : vector<16x256xf32>
    %61 = vector.extract_strided_slice %29 {offsets = [0, 5], sizes = [16, 1], strides = [1, 1]} : vector<16x8xf32> to vector<16x1xf32>
    %62 = vector.extract_strided_slice %31 {offsets = [5, 0], sizes = [1, 256], strides = [1, 1]} : vector<8x256xf32> to vector<1x256xf32>
    %63 = vector.broadcast %61 : vector<16x1xf32> to vector<16x256xf32>
    %64 = vector.broadcast %62 : vector<1x256xf32> to vector<16x256xf32>
    %65 = arith.mulf %63, %64 : vector<16x256xf32>
    %66 = arith.addf %60, %65 : vector<16x256xf32>
    %67 = vector.extract_strided_slice %29 {offsets = [0, 6], sizes = [16, 1], strides = [1, 1]} : vector<16x8xf32> to vector<16x1xf32>
    %68 = vector.extract_strided_slice %31 {offsets = [6, 0], sizes = [1, 256], strides = [1, 1]} : vector<8x256xf32> to vector<1x256xf32>
    %69 = vector.broadcast %67 : vector<16x1xf32> to vector<16x256xf32>
    %70 = vector.broadcast %68 : vector<1x256xf32> to vector<16x256xf32>
    %71 = arith.mulf %69, %70 : vector<16x256xf32>
    %72 = arith.addf %66, %71 : vector<16x256xf32>
    %73 = vector.extract_strided_slice %29 {offsets = [0, 7], sizes = [16, 1], strides = [1, 1]} : vector<16x8xf32> to vector<16x1xf32>
    %74 = vector.extract_strided_slice %31 {offsets = [7, 0], sizes = [1, 256], strides = [1, 1]} : vector<8x256xf32> to vector<1x256xf32>
    %75 = vector.broadcast %73 : vector<16x1xf32> to vector<16x256xf32>
    %76 = vector.broadcast %74 : vector<1x256xf32> to vector<16x256xf32>
    %77 = arith.mulf %75, %76 : vector<16x256xf32>
    %78 = arith.addf %72, %77 : vector<16x256xf32>
    %c0_10 = arith.constant 0 : index
    %c0_11 = arith.constant 0 : index
    %79 = vector.load %arg7[%c0_10, %c0_11] : memref<16x16xf32, #tpu.memory_space<vmem>>, vector<16x16xf32>
    %c0_12 = arith.constant 0 : index
    %c0_13 = arith.constant 0 : index
    %c0_14 = arith.constant 0 : index
    %80 = vector.load %arg4[%c0_12, %c0_13, %c0_14] : memref<1x16x256xf32, #tpu.memory_space<vmem>>, vector<1x16x256xf32>
    %81 = vector.shape_cast %80 : vector<1x16x256xf32> to vector<16x256xf32>
    %82 = vector.extract_strided_slice %79 {offsets = [0, 0], sizes = [16, 1], strides = [1, 1]} : vector<16x16xf32> to vector<16x1xf32>
    %83 = vector.extract_strided_slice %81 {offsets = [0, 0], sizes = [1, 256], strides = [1, 1]} : vector<16x256xf32> to vector<1x256xf32>
    %84 = vector.broadcast %82 : vector<16x1xf32> to vector<16x256xf32>
    %85 = vector.broadcast %83 : vector<1x256xf32> to vector<16x256xf32>
    %86 = arith.mulf %84, %85 : vector<16x256xf32>
    %87 = vector.extract_strided_slice %79 {offsets = [0, 1], sizes = [16, 1], strides = [1, 1]} : vector<16x16xf32> to vector<16x1xf32>
    %88 = vector.extract_strided_slice %81 {offsets = [1, 0], sizes = [1, 256], strides = [1, 1]} : vector<16x256xf32> to vector<1x256xf32>
    %89 = vector.broadcast %87 : vector<16x1xf32> to vector<16x256xf32>
    %90 = vector.broadcast %88 : vector<1x256xf32> to vector<16x256xf32>
    %91 = arith.mulf %89, %90 : vector<16x256xf32>
    %92 = arith.addf %86, %91 : vector<16x256xf32>
    %93 = vector.extract_strided_slice %79 {offsets = [0, 2], sizes = [16, 1], strides = [1, 1]} : vector<16x16xf32> to vector<16x1xf32>
    %94 = vector.extract_strided_slice %81 {offsets = [2, 0], sizes = [1, 256], strides = [1, 1]} : vector<16x256xf32> to vector<1x256xf32>
    %95 = vector.broadcast %93 : vector<16x1xf32> to vector<16x256xf32>
    %96 = vector.broadcast %94 : vector<1x256xf32> to vector<16x256xf32>
    %97 = arith.mulf %95, %96 : vector<16x256xf32>
    %98 = arith.addf %92, %97 : vector<16x256xf32>
    %99 = vector.extract_strided_slice %79 {offsets = [0, 3], sizes = [16, 1], strides = [1, 1]} : vector<16x16xf32> to vector<16x1xf32>
    %100 = vector.extract_strided_slice %81 {offsets = [3, 0], sizes = [1, 256], strides = [1, 1]} : vector<16x256xf32> to vector<1x256xf32>
    %101 = vector.broadcast %99 : vector<16x1xf32> to vector<16x256xf32>
    %102 = vector.broadcast %100 : vector<1x256xf32> to vector<16x256xf32>
    %103 = arith.mulf %101, %102 : vector<16x256xf32>
    %104 = arith.addf %98, %103 : vector<16x256xf32>
    %105 = vector.extract_strided_slice %79 {offsets = [0, 4], sizes = [16, 1], strides = [1, 1]} : vector<16x16xf32> to vector<16x1xf32>
    %106 = vector.extract_strided_slice %81 {offsets = [4, 0], sizes = [1, 256], strides = [1, 1]} : vector<16x256xf32> to vector<1x256xf32>
    %107 = vector.broadcast %105 : vector<16x1xf32> to vector<16x256xf32>
    %108 = vector.broadcast %106 : vector<1x256xf32> to vector<16x256xf32>
    %109 = arith.mulf %107, %108 : vector<16x256xf32>
    %110 = arith.addf %104, %109 : vector<16x256xf32>
    %111 = vector.extract_strided_slice %79 {offsets = [0, 5], sizes = [16, 1], strides = [1, 1]} : vector<16x16xf32> to vector<16x1xf32>
    %112 = vector.extract_strided_slice %81 {offsets = [5, 0], sizes = [1, 256], strides = [1, 1]} : vector<16x256xf32> to vector<1x256xf32>
    %113 = vector.broadcast %111 : vector<16x1xf32> to vector<16x256xf32>
    %114 = vector.broadcast %112 : vector<1x256xf32> to vector<16x256xf32>
    %115 = arith.mulf %113, %114 : vector<16x256xf32>
    %116 = arith.addf %110, %115 : vector<16x256xf32>
    %117 = vector.extract_strided_slice %79 {offsets = [0, 6], sizes = [16, 1], strides = [1, 1]} : vector<16x16xf32> to vector<16x1xf32>
    %118 = vector.extract_strided_slice %81 {offsets = [6, 0], sizes = [1, 256], strides = [1, 1]} : vector<16x256xf32> to vector<1x256xf32>
    %119 = vector.broadcast %117 : vector<16x1xf32> to vector<16x256xf32>
    %120 = vector.broadcast %118 : vector<1x256xf32> to vector<16x256xf32>
    %121 = arith.mulf %119, %120 : vector<16x256xf32>
    %122 = arith.addf %116, %121 : vector<16x256xf32>
    %123 = vector.extract_strided_slice %79 {offsets = [0, 7], sizes = [16, 1], strides = [1, 1]} : vector<16x16xf32> to vector<16x1xf32>
    %124 = vector.extract_strided_slice %81 {offsets = [7, 0], sizes = [1, 256], strides = [1, 1]} : vector<16x256xf32> to vector<1x256xf32>
    %125 = vector.broadcast %123 : vector<16x1xf32> to vector<16x256xf32>
    %126 = vector.broadcast %124 : vector<1x256xf32> to vector<16x256xf32>
    %127 = arith.mulf %125, %126 : vector<16x256xf32>
    %128 = arith.addf %122, %127 : vector<16x256xf32>
    %129 = vector.extract_strided_slice %79 {offsets = [0, 8], sizes = [16, 1], strides = [1, 1]} : vector<16x16xf32> to vector<16x1xf32>
    %130 = vector.extract_strided_slice %81 {offsets = [8, 0], sizes = [1, 256], strides = [1, 1]} : vector<16x256xf32> to vector<1x256xf32>
    %131 = vector.broadcast %129 : vector<16x1xf32> to vector<16x256xf32>
    %132 = vector.broadcast %130 : vector<1x256xf32> to vector<16x256xf32>
    %133 = arith.mulf %131, %132 : vector<16x256xf32>
    %134 = arith.addf %128, %133 : vector<16x256xf32>
    %135 = vector.extract_strided_slice %79 {offsets = [0, 9], sizes = [16, 1], strides = [1, 1]} : vector<16x16xf32> to vector<16x1xf32>
    %136 = vector.extract_strided_slice %81 {offsets = [9, 0], sizes = [1, 256], strides = [1, 1]} : vector<16x256xf32> to vector<1x256xf32>
    %137 = vector.broadcast %135 : vector<16x1xf32> to vector<16x256xf32>
    %138 = vector.broadcast %136 : vector<1x256xf32> to vector<16x256xf32>
    %139 = arith.mulf %137, %138 : vector<16x256xf32>
    %140 = arith.addf %134, %139 : vector<16x256xf32>
    %141 = vector.extract_strided_slice %79 {offsets = [0, 10], sizes = [16, 1], strides = [1, 1]} : vector<16x16xf32> to vector<16x1xf32>
    %142 = vector.extract_strided_slice %81 {offsets = [10, 0], sizes = [1, 256], strides = [1, 1]} : vector<16x256xf32> to vector<1x256xf32>
    %143 = vector.broadcast %141 : vector<16x1xf32> to vector<16x256xf32>
    %144 = vector.broadcast %142 : vector<1x256xf32> to vector<16x256xf32>
    %145 = arith.mulf %143, %144 : vector<16x256xf32>
    %146 = arith.addf %140, %145 : vector<16x256xf32>
    %147 = vector.extract_strided_slice %79 {offsets = [0, 11], sizes = [16, 1], strides = [1, 1]} : vector<16x16xf32> to vector<16x1xf32>
    %148 = vector.extract_strided_slice %81 {offsets = [11, 0], sizes = [1, 256], strides = [1, 1]} : vector<16x256xf32> to vector<1x256xf32>
    %149 = vector.broadcast %147 : vector<16x1xf32> to vector<16x256xf32>
    %150 = vector.broadcast %148 : vector<1x256xf32> to vector<16x256xf32>
    %151 = arith.mulf %149, %150 : vector<16x256xf32>
    %152 = arith.addf %146, %151 : vector<16x256xf32>
    %153 = vector.extract_strided_slice %79 {offsets = [0, 12], sizes = [16, 1], strides = [1, 1]} : vector<16x16xf32> to vector<16x1xf32>
    %154 = vector.extract_strided_slice %81 {offsets = [12, 0], sizes = [1, 256], strides = [1, 1]} : vector<16x256xf32> to vector<1x256xf32>
    %155 = vector.broadcast %153 : vector<16x1xf32> to vector<16x256xf32>
    %156 = vector.broadcast %154 : vector<1x256xf32> to vector<16x256xf32>
    %157 = arith.mulf %155, %156 : vector<16x256xf32>
    %158 = arith.addf %152, %157 : vector<16x256xf32>
    %159 = vector.extract_strided_slice %79 {offsets = [0, 13], sizes = [16, 1], strides = [1, 1]} : vector<16x16xf32> to vector<16x1xf32>
    %160 = vector.extract_strided_slice %81 {offsets = [13, 0], sizes = [1, 256], strides = [1, 1]} : vector<16x256xf32> to vector<1x256xf32>
    %161 = vector.broadcast %159 : vector<16x1xf32> to vector<16x256xf32>
    %162 = vector.broadcast %160 : vector<1x256xf32> to vector<16x256xf32>
    %163 = arith.mulf %161, %162 : vector<16x256xf32>
    %164 = arith.addf %158, %163 : vector<16x256xf32>
    %165 = vector.extract_strided_slice %79 {offsets = [0, 14], sizes = [16, 1], strides = [1, 1]} : vector<16x16xf32> to vector<16x1xf32>
    %166 = vector.extract_strided_slice %81 {offsets = [14, 0], sizes = [1, 256], strides = [1, 1]} : vector<16x256xf32> to vector<1x256xf32>
    %167 = vector.broadcast %165 : vector<16x1xf32> to vector<16x256xf32>
    %168 = vector.broadcast %166 : vector<1x256xf32> to vector<16x256xf32>
    %169 = arith.mulf %167, %168 : vector<16x256xf32>
    %170 = arith.addf %164, %169 : vector<16x256xf32>
    %171 = vector.extract_strided_slice %79 {offsets = [0, 15], sizes = [16, 1], strides = [1, 1]} : vector<16x16xf32> to vector<16x1xf32>
    %172 = vector.extract_strided_slice %81 {offsets = [15, 0], sizes = [1, 256], strides = [1, 1]} : vector<16x256xf32> to vector<1x256xf32>
    %173 = vector.broadcast %171 : vector<16x1xf32> to vector<16x256xf32>
    %174 = vector.broadcast %172 : vector<1x256xf32> to vector<16x256xf32>
    %175 = arith.mulf %173, %174 : vector<16x256xf32>
    %176 = arith.addf %170, %175 : vector<16x256xf32>
    %177 = tpu.concatenate %28, %78, %176 in 0 : vector<16x256xf32>, vector<16x256xf32>, vector<16x256xf32> -> vector<48x256xf32>
    %c0_15 = arith.constant 0 : index
    %c0_16 = arith.constant 0 : index
    %178 = vector.load %arg8[%c0_15, %c0_16] : memref<48x1xf32, #tpu.memory_space<vmem>>, vector<48x1xf32>
    %179 = vector.broadcast %178 : vector<48x1xf32> to vector<48x256xf32>
    %180 = arith.addf %177, %179 : vector<48x256xf32>
    %c0_17 = arith.constant 0 : index
    %c0_18 = arith.constant 0 : index
    %c0_19 = arith.constant 0 : index
    %181 = vector.load %arg11[%c0_17, %c0_18, %c0_19] : memref<1x48x256xf32, #tpu.memory_space<vmem>>, vector<1x48x256xf32>
    %182 = vector.shape_cast %181 : vector<1x48x256xf32> to vector<48x256xf32>
    %183 = vector.shape_cast %180 : vector<48x256xf32> to vector<1x48x256xf32>
    tpu.vector_store %arg11[%c0_17, %c0_18, %c0_19], %183 {strides = array<i32>} : memref<1x48x256xf32, #tpu.memory_space<vmem>>, vector<1x48x256xf32>,
    %184 = tpu.iota {dimensions = array<i32: 1>} : vector<48x256xi32>
    %c256_i32 = arith.constant 256 : i32
    %185 = arith.muli %arg1, %c256_i32 : i32
    %186 = vector.broadcast %185 : i32 to vector<48x256xi32>
    %187 = arith.addi %186, %184 : vector<48x256xi32>
    %c256_i32_20 = arith.constant 256 : i32
    %188 = vector.broadcast %c256_i32_20 : i32 to vector<48x256xi32>
    %189 = arith.cmpi slt, %187, %188 : vector<48x256xi32>
    %c0_21 = arith.constant 0 : index
    %c0_22 = arith.constant 0 : index
    %190 = vector.load %arg13[%c0_21, %c0_22] : memref<48x1xf32, #tpu.memory_space<vmem>>, vector<48x1xf32>
    %cst = arith.constant 0xFF800000 : f32
    %191 = vector.broadcast %cst : f32 to vector<48x256xf32>
    %192 = arith.select %189, %180, %191 : vector<48x256xi1>, vector<48x256xf32>
    %cst_23 = arith.constant dense<0xFF800000> : vector<48xf32>
    %193 = vector.multi_reduction <maximumf>, %192, %cst_23 [1] : vector<48x256xf32> to vector<48xf32>
    %194 = vector.shape_cast %193 : vector<48xf32> to vector<48x1xf32>
    %195 = arith.maximumf %190, %194 : vector<48x1xf32>
    %c0_24 = arith.constant 0 : index
    %c0_25 = arith.constant 0 : index
    %196 = vector.load %arg13[%c0_24, %c0_25] : memref<48x1xf32, #tpu.memory_space<vmem>>, vector<48x1xf32>
    tpu.vector_store %arg13[%c0_24, %c0_25], %195 {strides = array<i32>} : memref<48x1xf32, #tpu.memory_space<vmem>>, vector<48x1xf32>,
    %c0_26 = arith.constant 0 : index
    %c0_27 = arith.constant 0 : index
    %197 = vector.load %arg14[%c0_26, %c0_27] : memref<48x1xf32, #tpu.memory_space<vmem>>, vector<48x1xf32>
    %cst_28 = arith.constant 0.000000e+00 : f32
    %198 = vector.broadcast %cst_28 : f32 to vector<48x256xf32>
    %199 = arith.select %189, %180, %198 : vector<48x256xi1>, vector<48x256xf32>
    %cst_29 = arith.constant dense<0.000000e+00> : vector<48xf32>
    %200 = vector.multi_reduction <add>, %199, %cst_29 [1] : vector<48x256xf32> to vector<48xf32>
    %201 = vector.shape_cast %200 : vector<48xf32> to vector<48x1xf32>
    %202 = arith.addf %197, %201 : vector<48x1xf32>
    %c0_30 = arith.constant 0 : index
    %c0_31 = arith.constant 0 : index
    %203 = vector.load %arg14[%c0_30, %c0_31] : memref<48x1xf32, #tpu.memory_space<vmem>>, vector<48x1xf32>
    tpu.vector_store %arg14[%c0_30, %c0_31], %202 {strides = array<i32>} : memref<48x1xf32, #tpu.memory_space<vmem>>, vector<48x1xf32>,
    %c0_i32_32 = arith.constant 0 : i32
    %204 = arith.cmpi eq, %arg1, %c0_i32_32 : i32
    %205 = arith.extui %204 : i1 to i32
    %c0_i32_33 = arith.constant 0 : i32
    %206 = arith.cmpi ne, %205, %c0_i32_33 : i32
    scf.if %206 {
      %c0_34 = arith.constant 0 : index
      %c0_35 = arith.constant 0 : index
      %207 = vector.load %arg13[%c0_34, %c0_35] : memref<48x1xf32, #tpu.memory_space<vmem>>, vector<48x1xf32>
      %c0_36 = arith.constant 0 : index
      %c0_37 = arith.constant 0 : index
      %208 = vector.load %arg14[%c0_36, %c0_37] : memref<48x1xf32, #tpu.memory_space<vmem>>, vector<48x1xf32>
      %cst_38 = arith.constant 3.906250e-03 : f32
      %209 = vector.broadcast %cst_38 : f32 to vector<48x1xf32>
      %210 = arith.mulf %208, %209 : vector<48x1xf32>
      %c0_39 = arith.constant 0 : index
      %c0_40 = arith.constant 0 : index
      %211 = vector.load %arg9[%c0_39, %c0_40] : memref<48x48xf32, #tpu.memory_space<vmem>>, vector<48x48xf32>
      %cst_41 = arith.constant dense<0.000000e+00> : vector<48x1xf32>
      %212 = tpu.matmul %211, %207, %cst_41 {dimension_numbers = #tpu.dot_dimension_numbers<[1], [0], [0], [1], [0, 0, 1, 1], [], []>} : vector<48x48xf32>, vector<48x1xf32>, vector<48x1xf32> -> vector<48x1xf32>
      %c0_42 = arith.constant 0 : index
      %c0_43 = arith.constant 0 : index
      %213 = vector.load %arg10[%c0_42, %c0_43] : memref<48x1xf32, #tpu.memory_space<vmem>>, vector<48x1xf32>
      %214 = arith.addf %212, %213 : vector<48x1xf32>
      %cst_44 = arith.constant dense<0.000000e+00> : vector<48x1xf32>
      %215 = tpu.matmul %211, %210, %cst_44 {dimension_numbers = #tpu.dot_dimension_numbers<[1], [0], [0], [1], [0, 0, 1, 1], [], []>} : vector<48x48xf32>, vector<48x1xf32>, vector<48x1xf32> -> vector<48x1xf32>
      %216 = arith.addf %214, %215 : vector<48x1xf32>
      %c0_45 = arith.constant 0 : index
      %c0_46 = arith.constant 0 : index
      %217 = vector.load %arg10[%c0_45, %c0_46] : memref<48x1xf32, #tpu.memory_space<vmem>>, vector<48x1xf32>
      %218 = arith.addf %216, %217 : vector<48x1xf32>
      %219 = arith.negf %218 : vector<48x1xf32>
      %220 = math.exp %219 : vector<48x1xf32>
      %cst_47 = arith.constant 1.000000e+00 : f32
      %221 = vector.broadcast %cst_47 : f32 to vector<48x1xf32>
      %222 = arith.addf %221, %220 : vector<48x1xf32>
      %223 = arith.divf %221, %222 : vector<48x1xf32>
      %c0_48 = arith.constant 0 : index
      %c0_49 = arith.constant 0 : index
      %c0_50 = arith.constant 0 : index
      %224 = vector.load %arg12[%c0_48, %c0_49, %c0_50] : memref<1x48x1xf32, #tpu.memory_space<vmem>>, vector<1x48x1xf32>
      %225 = vector.shape_cast %224 : vector<1x48x1xf32> to vector<48x1xf32>
      %226 = vector.shape_cast %223 : vector<48x1xf32> to vector<1x48x1xf32>
      tpu.vector_store %arg12[%c0_48, %c0_49, %c0_50], %226 {strides = array<i32>} : memref<1x48x1xf32, #tpu.memory_space<vmem>>, vector<1x48x1xf32>,
    } else {
    }
    return
  }
  func.func @transform_0(%arg0: i32, %arg1: i32) -> (i32, i32, i32) {
    %c0_i32 = arith.constant 0 : i32
    %c0_i32_0 = arith.constant 0 : i32
    return %arg0, %c0_i32, %arg1 : i32, i32, i32
  }
  func.func @transform_1(%arg0: i32, %arg1: i32) -> (i32, i32, i32) {
    %c0_i32 = arith.constant 0 : i32
    %c0_i32_0 = arith.constant 0 : i32
    return %arg0, %c0_i32, %arg1 : i32, i32, i32
  }
  func.func @transform_2(%arg0: i32, %arg1: i32) -> (i32, i32, i32) {
    %c0_i32 = arith.constant 0 : i32
    %c0_i32_0 = arith.constant 0 : i32
    return %arg0, %c0_i32, %arg1 : i32, i32, i32
  }
  func.func @transform_3(%arg0: i32, %arg1: i32) -> (i32, i32) {
    %c0_i32 = arith.constant 0 : i32
    %c0_i32_0 = arith.constant 0 : i32
    %c0_i32_1 = arith.constant 0 : i32
    return %c0_i32, %c0_i32_0 : i32, i32
  }
  func.func @transform_4(%arg0: i32, %arg1: i32) -> (i32, i32) {
    %c0_i32 = arith.constant 0 : i32
    %c0_i32_0 = arith.constant 0 : i32
    %c0_i32_1 = arith.constant 0 : i32
    return %c0_i32, %c0_i32_0 : i32, i32
  }
  func.func @transform_5(%arg0: i32, %arg1: i32) -> (i32, i32) {
    %c0_i32 = arith.constant 0 : i32
    %c0_i32_0 = arith.constant 0 : i32
    %c0_i32_1 = arith.constant 0 : i32
    return %c0_i32, %c0_i32_0 : i32, i32
  }
  func.func @transform_6(%arg0: i32, %arg1: i32) -> (i32, i32) {
    %c0_i32 = arith.constant 0 : i32
    %c0_i32_0 = arith.constant 0 : i32
    %c0_i32_1 = arith.constant 0 : i32
    return %c0_i32, %c0_i32_0 : i32, i32
  }
  func.func @transform_7(%arg0: i32, %arg1: i32) -> (i32, i32) {
    %c0_i32 = arith.constant 0 : i32
    %c0_i32_0 = arith.constant 0 : i32
    %c0_i32_1 = arith.constant 0 : i32
    return %c0_i32, %c0_i32_0 : i32, i32
  }
  func.func @transform_8(%arg0: i32, %arg1: i32) -> (i32, i32) {
    %c0_i32 = arith.constant 0 : i32
    %c0_i32_0 = arith.constant 0 : i32
    %c0_i32_1 = arith.constant 0 : i32
    return %c0_i32, %c0_i32_0 : i32, i32
  }
  func.func @transform_9(%arg0: i32, %arg1: i32) -> (i32, i32, i32) {
    %c0_i32 = arith.constant 0 : i32
    %c0_i32_0 = arith.constant 0 : i32
    return %arg0, %c0_i32, %arg1 : i32, i32, i32
  }
  func.func @transform_10(%arg0: i32, %arg1: i32) -> (i32, i32, i32) {
    %c0_i32 = arith.constant 0 : i32
    %c0_i32_0 = arith.constant 0 : i32
    %c0_i32_1 = arith.constant 0 : i32
    return %arg0, %c0_i32, %c0_i32_0 : i32, i32, i32
  }
}

</mosaic_0001>

<llo_original>
// kernel: tpu_custom_call.1
$region0: #{tpu_custom_call.1}
  #allocation0 [shape = 'u32[]', space=smem, size = 0x4, offset = 0x4, fixed_abs, tag = 'smem constant byte address 0x4 - core index']
  #allocation1 [shape = 'u32[144,128]{1,0:T(1,128)}', space=vmem, size = 0x12000, scoped, tag = 'internal scratch']
  #allocation2 [shape = 'f32[48,1]{1,0:T(8,128)}', space=vmem, size = 0x6000, scoped, tag = 'scratch operand']
  #allocation3 [shape = 'f32[48,1]{1,0:T(8,128)}', space=vmem, size = 0x6000, scoped, tag = 'scratch operand']
  %s0 = inlined_call_operand.vmem [shape: f32[2,4,256], index: 0, kind: input, shape index: {}]
  %s1 = inlined_call_operand.hbm [shape: f32[2,8,256], index: 1, kind: input, shape index: {}]
  %s2 = inlined_call_operand.vmem [shape: f32[2,16,256], index: 2, kind: input, shape index: {}]
  %s3 = inlined_call_operand.vmem [shape: f32[16,4], index: 3, kind: input, shape index: {}]
  %s4 = inlined_call_operand.vmem [shape: f32[16,8], index: 4, kind: input, shape index: {}]
  %s5 = inlined_call_operand.vmem [shape: f32[16,16], index: 5, kind: input, shape index: {}]
  %s6 = inlined_call_operand.vmem [shape: f32[48,1], index: 6, kind: input, shape index: {}]
  %s7 = inlined_call_operand.vmem [shape: f32[48,48], index: 7, kind: input, shape index: {}]
  %s8 = inlined_call_operand.vmem [shape: f32[48,1], index: 8, kind: input, shape index: {}]
  %s9 = inlined_call_operand.hbm [shape: f32[2,48,256], index: 9, kind: output, shape index: {0}]
  %s10 = inlined_call_operand.vmem [shape: f32[2,48,1], index: 10, kind: output, shape index: {1}]
  %11 = xla_tuple %s9, %s10
  %s12 = sld [smem:[#allocation0]]
  $region89: #{tpu_custom_call.1} parent=0
    _
  %s14 = ssub.s32 1, %s12
  %s15 = scalar_select 0, %s14, %s12
  $region1: #{tpu_custom_call.1} parent=0
    #allocation4 [shape = 'u8[16384]{0}', space=vmem, size = 0x4000, scoped, tag = 'input window, operand 1']
    #allocation5 [shape = 's32[2]{0}', space=sflag, size = 0x8, scoped, tag = 'scoped memory for tpu_custom_call.1']
    #allocation6 [shape = 's32[2]{0}', space=sflag, size = 0x8, scoped, tag = 'scoped memory for tpu_custom_call.1']
    #allocation7 [shape = 'u8[98304]{0}', space=vmem, size = 0x18000, scoped, tag = 'output window, operand 0']
    %16 = vsyncpa [#allocation5], 0
    %s17 = scalar_lea.sflag [#allocation5], 1
    %18 = vsyncpa %s17, 0
    %19 = vsyncpa [#allocation6], 0
    %s20 = scalar_lea.sflag [#allocation6], 1
    %21 = vsyncpa %s20, 0
    loop: start=0, step=1, limit=4
    $region2: #{tpu_custom_call.1} parent=1 // loop_pre_header
      _
    $region3: #{tpu_custom_call.1} parent=1 // loop_header
      %s23 = sphi 0, %s27
      %p24 = scmp.ge.s32.totalorder %s23, 4
      %s30 = sphi 0, %s42
      %s31 = sphi 0, %s38
      %s32 = sphi 0, %s30
      %s33 = sphi 0, %s31
      %s34 = sphi 0, %s32
      %s35 = sphi 0, %s33
      %s47 = sphi 0, %s49
      %s50 = sphi 0, %s47
      %s51 = sphi 0, %s50
      %s67 = sphi 0, %s51
      %s75 = sphi 0, %s77
      %s78 = sphi 0, %s75
      %s79 = sphi 0, %s78
      %s95 = sphi 0, %s79
      %s103 = sphi 0, %s105
      %s106 = sphi 0, %s103
      %s107 = sphi 0, %s106
      %s123 = sphi 0, %s107
      %s127 = sphi 0, %s127
      %s129 = sphi 0, %s127
      %s130 = sphi 0, %s129
      %s144 = sphi 0, %s130
      %s148 = sphi 0, %s148
      %s150 = sphi 0, %s148
      %s151 = sphi 0, %s150
      %s165 = sphi 0, %s151
      %s169 = sphi 0, %s169
      %s171 = sphi 0, %s169
      %s172 = sphi 0, %s171
      %s186 = sphi 0, %s172
      %s190 = sphi 0, %s190
      %s192 = sphi 0, %s190
      %s193 = sphi 0, %s192
      %s207 = sphi 0, %s193
      %s211 = sphi 0, %s211
      %s213 = sphi 0, %s211
      %s214 = sphi 0, %s213
      %s228 = sphi 0, %s214
      %s232 = sphi 0, %s232
      %s234 = sphi 0, %s232
      %s235 = sphi 0, %s234
      %s249 = sphi 0, %s235
      %s257 = sphi 0, %s259
      %s260 = sphi 0, %s257
      %s261 = sphi 0, %s260
      %s277 = sphi 0, %s261
      %s283 = sphi 0, %s285
      %s286 = sphi 0, %s283
      %s287 = sphi 0, %s286
      %s303 = sphi 0, %s287
    $region4: #{tpu_custom_call.1} parent=1 // loop_header_branch
      %26 = sbr.rel (%p24) target = $region8
    $region5: #{tpu_custom_call.1} parent=1 // loop_body
      %s28 = ssub.s32 %s23, 1
      %s29 = ssub.s32 %s23, 2
      %s36 = sadd.s32 1, %s31
      %p37 = scmp.ge.s32.totalorder %s36, 1
      %s38 = scalar_select %p37, 0, %s36
      %s39 = sadd.s32 1, %s30
      %s40 = scalar_select %p37, %s39, %s30
      %p41 = scmp.ge.s32.totalorder %s40, 2
      %s42 = scalar_select %p41, 0, %s40
      %s43 = ssub.s32 %s30, %s42
      %s44 = ssub.s32 %s31, %s38
      %s45 = sor.u32 %s43, %s44
      %p46 = scmp.eq.s32.totalorder %s45, 0
      %s48 = sadd.s32 %s47, 1
      %s49 = scalar_select %p46, %s47, %s48
      %p52 = pneg %p46
      %p53 = scmp.eq.s32.totalorder %s23, 1
      %p54 = por %p52, %p53
      %p55 = scmp.ne.s32.totalorder %s47, %s50
      %p56 = scmp.eq.s32.totalorder %s23, 0
      %p57 = por %p55, %p56
      %p58 = scmp.ne.s32.totalorder %s47, %s50
      %p59 = scmp.eq.s32.totalorder %s28, 1
      %p60 = por %p58, %p59
      %p61 = scmp.ne.s32.totalorder %s50, %s51
      %p62 = scmp.eq.s32.totalorder %s28, 0
      %p63 = por %p61, %p62
      %p64 = scmp.ne.s32.totalorder %s50, %s51
      %p65 = scmp.eq.s32.totalorder %s29, 1
      %p66 = por %p64, %p65
      %p68 = scmp.ne.s32.totalorder %s51, %s67
      %p69 = scmp.eq.s32.totalorder %s29, 0
      %p70 = por %p68, %p69
      %s71 = ssub.s32 %s30, %s42
      %s72 = ssub.s32 %s31, %s38
      %s73 = sor.u32 %s71, %s72
      %p74 = scmp.eq.s32.totalorder %s73, 0
      %s76 = sadd.s32 %s75, 1
      %s77 = scalar_select %p74, %s75, %s76
      %p80 = pneg %p74
      %p81 = scmp.eq.s32.totalorder %s23, 1
      %p82 = por %p80, %p81
      %p83 = scmp.ne.s32.totalorder %s75, %s78
      %p84 = scmp.eq.s32.totalorder %s23, 0
      %p85 = por %p83, %p84
      %p86 = scmp.ne.s32.totalorder %s75, %s78
      %p87 = scmp.eq.s32.totalorder %s28, 1
      %p88 = por %p86, %p87
      %p89 = scmp.ne.s32.totalorder %s78, %s79
      %p90 = scmp.eq.s32.totalorder %s28, 0
      %p91 = por %p89, %p90
      %p92 = scmp.ne.s32.totalorder %s78, %s79
      %p93 = scmp.eq.s32.totalorder %s29, 1
      %p94 = por %p92, %p93
      %p96 = scmp.ne.s32.totalorder %s79, %s95
      %p97 = scmp.eq.s32.totalorder %s29, 0
      %p98 = por %p96, %p97
      %s99 = ssub.s32 %s30, %s42
      %s100 = ssub.s32 %s31, %s38
      %s101 = sor.u32 %s99, %s100
      %p102 = scmp.eq.s32.totalorder %s101, 0
      %s104 = sadd.s32 %s103, 1
      %s105 = scalar_select %p102, %s103, %s104
      %p108 = pneg %p102
      %p109 = scmp.eq.s32.totalorder %s23, 1
      %p110 = por %p108, %p109
      %p111 = scmp.ne.s32.totalorder %s103, %s106
      %p112 = scmp.eq.s32.totalorder %s23, 0
      %p113 = por %p111, %p112
      %p114 = scmp.ne.s32.totalorder %s103, %s106
      %p115 = scmp.eq.s32.totalorder %s28, 1
      %p116 = por %p114, %p115
      %p117 = scmp.ne.s32.totalorder %s106, %s107
      %p118 = scmp.eq.s32.totalorder %s28, 0
      %p119 = por %p117, %p118
      %p120 = scmp.ne.s32.totalorder %s106, %s107
      %p121 = scmp.eq.s32.totalorder %s29, 1
      %p122 = por %p120, %p121
      %p124 = scmp.ne.s32.totalorder %s107, %s123
      %p125 = scmp.eq.s32.totalorder %s29, 0
      %p126 = por %p124, %p125
      %s128 = sadd.s32 %s127, 1
      %p131 = scmp.eq.s32.totalorder %s23, 1
      %p132 = scmp.ne.s32.totalorder %s127, %s129
      %p133 = scmp.eq.s32.totalorder %s23, 0
      %p134 = por %p132, %p133
      %p135 = scmp.ne.s32.totalorder %s127, %s129
      %p136 = scmp.eq.s32.totalorder %s28, 1
      %p137 = por %p135, %p136
      %p138 = scmp.ne.s32.totalorder %s129, %s130
      %p139 = scmp.eq.s32.totalorder %s28, 0
      %p140 = por %p138, %p139
      %p141 = scmp.ne.s32.totalorder %s129, %s130
      %p142 = scmp.eq.s32.totalorder %s29, 1
      %p143 = por %p141, %p142
      %p145 = scmp.ne.s32.totalorder %s130, %s144
      %p146 = scmp.eq.s32.totalorder %s29, 0
      %p147 = por %p145, %p146
      %s149 = sadd.s32 %s148, 1
      %p152 = scmp.eq.s32.totalorder %s23, 1
      %p153 = scmp.ne.s32.totalorder %s148, %s150
      %p154 = scmp.eq.s32.totalorder %s23, 0
      %p155 = por %p153, %p154
      %p156 = scmp.ne.s32.totalorder %s148, %s150
      %p157 = scmp.eq.s32.totalorder %s28, 1
      %p158 = por %p156, %p157
      %p159 = scmp.ne.s32.totalorder %s150, %s151
      %p160 = scmp.eq.s32.totalorder %s28, 0
      %p161 = por %p159, %p160
      %p162 = scmp.ne.s32.totalorder %s150, %s151
      %p163 = scmp.eq.s32.totalorder %s29, 1
      %p164 = por %p162, %p163
      %p166 = scmp.ne.s32.totalorder %s151, %s165
      %p167 = scmp.eq.s32.totalorder %s29, 0
      %p168 = por %p166, %p167
      %s170 = sadd.s32 %s169, 1
      %p173 = scmp.eq.s32.totalorder %s23, 1
      %p174 = scmp.ne.s32.totalorder %s169, %s171
      %p175 = scmp.eq.s32.totalorder %s23, 0
      %p176 = por %p174, %p175
      %p177 = scmp.ne.s32.totalorder %s169, %s171
      %p178 = scmp.eq.s32.totalorder %s28, 1
      %p179 = por %p177, %p178
      %p180 = scmp.ne.s32.totalorder %s171, %s172
      %p181 = scmp.eq.s32.totalorder %s28, 0
      %p182 = por %p180, %p181
      %p183 = scmp.ne.s32.totalorder %s171, %s172
      %p184 = scmp.eq.s32.totalorder %s29, 1
      %p185 = por %p183, %p184
      %p187 = scmp.ne.s32.totalorder %s172, %s186
      %p188 = scmp.eq.s32.totalorder %s29, 0
      %p189 = por %p187, %p188
      %s191 = sadd.s32 %s190, 1
      %p194 = scmp.eq.s32.totalorder %s23, 1
      %p195 = scmp.ne.s32.totalorder %s190, %s192
      %p196 = scmp.eq.s32.totalorder %s23, 0
      %p197 = por %p195, %p196
      %p198 = scmp.ne.s32.totalorder %s190, %s192
      %p199 = scmp.eq.s32.totalorder %s28, 1
      %p200 = por %p198, %p199
      %p201 = scmp.ne.s32.totalorder %s192, %s193
      %p202 = scmp.eq.s32.totalorder %s28, 0
      %p203 = por %p201, %p202
      %p204 = scmp.ne.s32.totalorder %s192, %s193
      %p205 = scmp.eq.s32.totalorder %s29, 1
      %p206 = por %p204, %p205
      %p208 = scmp.ne.s32.totalorder %s193, %s207
      %p209 = scmp.eq.s32.totalorder %s29, 0
      %p210 = por %p208, %p209
      %s212 = sadd.s32 %s211, 1
      %p215 = scmp.eq.s32.totalorder %s23, 1
      %p216 = scmp.ne.s32.totalorder %s211, %s213
      %p217 = scmp.eq.s32.totalorder %s23, 0
      %p218 = por %p216, %p217
      %p219 = scmp.ne.s32.totalorder %s211, %s213
      %p220 = scmp.eq.s32.totalorder %s28, 1
      %p221 = por %p219, %p220
      %p222 = scmp.ne.s32.totalorder %s213, %s214
      %p223 = scmp.eq.s32.totalorder %s28, 0
      %p224 = por %p222, %p223
      %p225 = scmp.ne.s32.totalorder %s213, %s214
      %p226 = scmp.eq.s32.totalorder %s29, 1
      %p227 = por %p225, %p226
      %p229 = scmp.ne.s32.totalorder %s214, %s228
      %p230 = scmp.eq.s32.totalorder %s29, 0
      %p231 = por %p229, %p230
      %s233 = sadd.s32 %s232, 1
      %p236 = scmp.eq.s32.totalorder %s23, 1
      %p237 = scmp.ne.s32.totalorder %s232, %s234
      %p238 = scmp.eq.s32.totalorder %s23, 0
      %p239 = por %p237, %p238
      %p240 = scmp.ne.s32.totalorder %s232, %s234
      %p241 = scmp.eq.s32.totalorder %s28, 1
      %p242 = por %p240, %p241
      %p243 = scmp.ne.s32.totalorder %s234, %s235
      %p244 = scmp.eq.s32.totalorder %s28, 0
      %p245 = por %p243, %p244
      %p246 = scmp.ne.s32.totalorder %s234, %s235
      %p247 = scmp.eq.s32.totalorder %s29, 1
      %p248 = por %p246, %p247
      %p250 = scmp.ne.s32.totalorder %s235, %s249
      %p251 = scmp.eq.s32.totalorder %s29, 0
      %p252 = por %p250, %p251
      %s253 = ssub.s32 %s30, %s42
      %s254 = ssub.s32 %s31, %s38
      %s255 = sor.u32 %s253, %s254
      %p256 = scmp.eq.s32.totalorder %s255, 0
      %s258 = sadd.s32 %s257, 1
      %s259 = scalar_select %p256, %s257, %s258
      %p262 = pneg %p256
      %p263 = scmp.eq.s32.totalorder %s23, 1
      %p264 = por %p262, %p263
      %p265 = scmp.ne.s32.totalorder %s257, %s260
      %p266 = scmp.eq.s32.totalorder %s23, 0
      %p267 = por %p265, %p266
      %p268 = scmp.ne.s32.totalorder %s257, %s260
      %p269 = scmp.eq.s32.totalorder %s28, 1
      %p270 = por %p268, %p269
      %p271 = scmp.ne.s32.totalorder %s260, %s261
      %p272 = scmp.eq.s32.totalorder %s28, 0
      %p273 = por %p271, %p272
      %p274 = scmp.ne.s32.totalorder %s260, %s261
      %p275 = scmp.eq.s32.totalorder %s29, 1
      %p276 = por %p274, %p275
      %p278 = scmp.ne.s32.totalorder %s261, %s277
      %p279 = scmp.eq.s32.totalorder %s29, 0
      %p280 = por %p278, %p279
      %s281 = ssub.s32 %s30, %s42
      %p282 = scmp.eq.s32.totalorder %s281, 0
      %s284 = sadd.s32 %s283, 1
      %s285 = scalar_select %p282, %s283, %s284
      %p288 = pneg %p282
      %p289 = scmp.eq.s32.totalorder %s23, 1
      %p290 = por %p288, %p289
      %p291 = scmp.ne.s32.totalorder %s283, %s286
      %p292 = scmp.eq.s32.totalorder %s23, 0
      %p293 = por %p291, %p292
      %p294 = scmp.ne.s32.totalorder %s283, %s286
      %p295 = scmp.eq.s32.totalorder %s28, 1
      %p296 = por %p294, %p295
      %p297 = scmp.ne.s32.totalorder %s286, %s287
      %p298 = scmp.eq.s32.totalorder %s28, 0
      %p299 = por %p297, %p298
      %p300 = scmp.ne.s32.totalorder %s286, %s287
      %p301 = scmp.eq.s32.totalorder %s29, 1
      %p302 = por %p300, %p301
      %p304 = scmp.ne.s32.totalorder %s287, %s303
      %p305 = scmp.eq.s32.totalorder %s29, 0
      %p306 = por %p304, %p305
      %p307 = scmp.le.s32.totalorder 1, %s23
      %p308 = scmp.lt.s32.totalorder %s23, 3
      %p309 = pnand %p307, %p308
      %p310 = pneg %p309
      // Predicated region
      $region9: #{tpu_custom_call.1} parent=5 // pred_check
        _
      $region10: #{tpu_custom_call.1} parent=5 // pred_check_branch
        %312 = sbr.rel (%p309) target = $region12
      $region11: #{tpu_custom_call.1} parent=5 // pred_region
        %s313 = ssub.s32 %s23, 1
        // Predicated region
        $region13: #{tpu_custom_call.1} parent=11 // pred_check
          %p314 = pneg %p140
        $region14: #{tpu_custom_call.1} parent=11 // pred_check_branch
          %316 = sbr.rel (%p314) target = $region16
        $region15: #{tpu_custom_call.1} parent=11 // pred_region
          _
        $region16: #{tpu_custom_call.1} parent=11 // pred_fallthru
          _
        // Predicated region
        $region17: #{tpu_custom_call.1} parent=11 // pred_check
          %p317 = pneg %p161
        $region18: #{tpu_custom_call.1} parent=11 // pred_check_branch
          %319 = sbr.rel (%p317) target = $region20
        $region19: #{tpu_custom_call.1} parent=11 // pred_region
          _
        $region20: #{tpu_custom_call.1} parent=11 // pred_fallthru
          _
        // Predicated region
        $region21: #{tpu_custom_call.1} parent=11 // pred_check
          %p320 = pneg %p182
        $region22: #{tpu_custom_call.1} parent=11 // pred_check_branch
          %322 = sbr.rel (%p320) target = $region24
        $region23: #{tpu_custom_call.1} parent=11 // pred_region
          _
        $region24: #{tpu_custom_call.1} parent=11 // pred_fallthru
          _
        // Predicated region
        $region25: #{tpu_custom_call.1} parent=11 // pred_check
          %p323 = pneg %p203
        $region26: #{tpu_custom_call.1} parent=11 // pred_check_branch
          %325 = sbr.rel (%p323) target = $region28
        $region27: #{tpu_custom_call.1} parent=11 // pred_region
          _
        $region28: #{tpu_custom_call.1} parent=11 // pred_fallthru
          _
        // Predicated region
        $region29: #{tpu_custom_call.1} parent=11 // pred_check
          %p326 = pneg %p224
        $region30: #{tpu_custom_call.1} parent=11 // pred_check_branch
          %328 = sbr.rel (%p326) target = $region32
        $region31: #{tpu_custom_call.1} parent=11 // pred_region
          _
        $region32: #{tpu_custom_call.1} parent=11 // pred_fallthru
          _
        // Predicated region
        $region33: #{tpu_custom_call.1} parent=11 // pred_check
          %p329 = pneg %p245
        $region34: #{tpu_custom_call.1} parent=11 // pred_check_branch
          %331 = sbr.rel (%p329) target = $region36
        $region35: #{tpu_custom_call.1} parent=11 // pred_region
          _
        $region36: #{tpu_custom_call.1} parent=11 // pred_fallthru
          _
      $region12: #{tpu_custom_call.1} parent=5 // pred_fallthru
        _
      %p332 = scmp.lt.s32.totalorder %s23, 2
      // Predicated region
      $region37: #{tpu_custom_call.1} parent=5 // pred_check
        %p333 = pneg %p332
      $region38: #{tpu_custom_call.1} parent=5 // pred_check_branch
        %335 = sbr.rel (%p333) target = $region40
      $region39: #{tpu_custom_call.1} parent=5 // pred_region
        // Predicated region
        $region41: #{tpu_custom_call.1} parent=39 // pred_check
          %p336 = pneg %p57
        $region42: #{tpu_custom_call.1} parent=39 // pred_check_branch
          %338 = sbr.rel (%p336) target = $region44
        $region43: #{tpu_custom_call.1} parent=39 // pred_region
          %s339 = smul.u32 2, %s31
          %p340 = scmp.lt.s32.totalorder %s30, 1
          %s341 = scalar_select %p340, %s30, 1
          %p342 = scmp.lt.s32.totalorder %s339, 1
          %s343 = scalar_select %p342, %s339, 1
          %s344 = smul.addr %s341, 2
          %s345 = sadd.s32 %s343, %s344
          %s346 = smul.addr %s345, 4
          %s347 = scalar_lea.vmem %s0, %s346
          %s348 = smul.u32 2, %s31
        $region44: #{tpu_custom_call.1} parent=39 // pred_fallthru
          _
        // Predicated region
        $region45: #{tpu_custom_call.1} parent=39 // pred_check
          %p349 = pneg %p85
        $region46: #{tpu_custom_call.1} parent=39 // pred_check_branch
          %351 = sbr.rel (%p349) target = $region48
        $region47: #{tpu_custom_call.1} parent=39 // pred_region
          %s352 = sand.u32 %s75, 1
          %s353 = scalar_lea.sflag [#allocation5], %s352
          %s354 = sand.u32 %s75, 1
          %s355 = smul.addr %s354, 16
          %s356 = scalar_lea.vmem [#allocation4], %s355
          %s357 = smul.u32 2, %s31
          %s359 = ssub.s32 256, 256
          %360 = vsyncadd %s353, %s359
          %s361 = smul.addr %s30, 2
          %s362 = sadd.s32 %s357, %s361
          %s363 = smul.addr %s362, 128
          %s364 = scalar_lea.hbm %s1, %s363
          %s366 = sshll.u32 %s356, 4
          %s367 = int_to_ptr.vmem [resolvable:$true] %s366
          %369 = dma.hbm_to_vmem [thread:$0]  %s364, 256, %s367, %s353
        $region48: #{tpu_custom_call.1} parent=39 // pred_fallthru
          _
        // Predicated region
        $region49: #{tpu_custom_call.1} parent=39 // pred_check
          %p370 = pneg %p113
        $region50: #{tpu_custom_call.1} parent=39 // pred_check_branch
          %372 = sbr.rel (%p370) target = $region52
        $region51: #{tpu_custom_call.1} parent=39 // pred_region
          %s373 = smul.u32 2, %s31
          %p374 = scmp.lt.s32.totalorder %s30, 1
          %s375 = scalar_select %p374, %s30, 1
          %p376 = scmp.lt.s32.totalorder %s373, 1
          %s377 = scalar_select %p376, %s373, 1
          %s378 = smul.addr %s375, 4
          %s379 = sadd.s32 %s377, %s378
          %s380 = smul.addr %s379, 8
          %s381 = scalar_lea.vmem %s2, %s380
          %s382 = smul.u32 2, %s31
        $region52: #{tpu_custom_call.1} parent=39 // pred_fallthru
          _
      $region40: #{tpu_custom_call.1} parent=5 // pred_fallthru
        _
      %p383 = scmp.le.s32.totalorder 1, %s23
      %p384 = scmp.lt.s32.totalorder %s23, 3
      %p385 = pnand %p383, %p384
      %p386 = pneg %p385
      // Predicated region
      $region53: #{tpu_custom_call.1} parent=5 // pred_check
        _
      $region54: #{tpu_custom_call.1} parent=5 // pred_check_branch
        %388 = sbr.rel (%p385) target = $region56
      $region55: #{tpu_custom_call.1} parent=5 // pred_region
        %s389 = ssub.s32 %s23, 1
        %s390 = sand.u32 %s78, 1
        %s391 = scalar_lea.sflag [#allocation5], %s390
        %s392 = sand.u32 %s78, 1
        %s393 = smul.addr %s392, 16
        %s394 = scalar_lea.vmem [#allocation4], %s393
        // Predicated region
        $region57: #{tpu_custom_call.1} parent=55 // pred_check
          %p395 = pneg %p91
        $region58: #{tpu_custom_call.1} parent=55 // pred_check_branch
          %397 = sbr.rel (%p395) target = $region60
        $region59: #{tpu_custom_call.1} parent=55 // pred_region
          %398 = dma.done %s391, 256
        $region60: #{tpu_custom_call.1} parent=55 // pred_fallthru
          _
        %s399 = smul.u32 2, %s33
        %p400 = scmp.lt.s32.totalorder %s32, 1
        %s401 = scalar_select %p400, %s32, 1
        %p402 = scmp.lt.s32.totalorder %s399, 1
        %s403 = scalar_select %p402, %s399, 1
        %s404 = smul.addr %s401, 2
        %s405 = sadd.s32 %s403, %s404
        %s406 = smul.addr %s405, 4
        %s407 = scalar_lea.vmem %s0, %s406
        %p408 = pneg %p63
        %p409 = pneg %p60
        %s410 = sand.u32 %s78, 1
        %s411 = scalar_lea.sflag [#allocation5], %s410
        %s412 = sand.u32 %s78, 1
        %s413 = smul.addr %s412, 16
        %s414 = scalar_lea.vmem [#allocation4], %s413
        %p415 = pneg %p91
        %p416 = pneg %p88
        %s417 = smul.u32 2, %s33
        %p418 = scmp.lt.s32.totalorder %s32, 1
        %s419 = scalar_select %p418, %s32, 1
        %p420 = scmp.lt.s32.totalorder %s417, 1
        %s421 = scalar_select %p420, %s417, 1
        %s422 = smul.addr %s419, 4
        %s423 = sadd.s32 %s421, %s422
        %s424 = smul.addr %s423, 8
        %s425 = scalar_lea.vmem %s2, %s424
        %p426 = pneg %p119
        %p427 = pneg %p116
        %p428 = pneg %p140
        %p429 = pneg %p137
        %p430 = pneg %p161
        %p431 = pneg %p158
        %p432 = pneg %p182
        %p433 = pneg %p179
        %p434 = pneg %p203
        %p435 = pneg %p200
        %p436 = pneg %p224
        %p437 = pneg %p221
        %p438 = pneg %p245
        %p439 = pneg %p242
        %p440 = pneg %p273
        %p441 = pneg %p270
        %s442 = sand.u32 %s260, 1
        %s443 = scalar_lea.sflag [#allocation6], %s442
        %s444 = sand.u32 %s260, 1
        %s445 = smul.addr %s444, 96
        %s446 = scalar_lea.vmem [#allocation7], %s445
        %p447 = pneg %p299
        %p448 = pneg %p296
        %p449 = scmp.lt.s32.totalorder %s32, 1
        %s450 = scalar_select %p449, %s32, 1
        %s451 = smul.addr %s450, 6
        %s452 = smul.addr %s451, 8
        %s453 = scalar_lea.vmem %s10, %s452
        %s454 = smul.u32 2, %s33
        %p455 = scmp.lt.s32.totalorder %s32, 1
        %s456 = scalar_select %p455, %s32, 1
        %p457 = scmp.lt.s32.totalorder %s454, 1
        %s458 = scalar_select %p457, %s454, 1
        %s459 = smul.addr %s456, 2
        %s460 = sadd.s32 %s458, %s459
        %s461 = smul.addr %s460, 4
        %s462 = scalar_lea.vmem %s0, %s461
        %s463 = smul.u32 2, %s33
        %s464 = smul.u32 2, %s33
        %s465 = smul.u32 2, %s33
        %p466 = scmp.lt.s32.totalorder %s32, 1
        %s467 = scalar_select %p466, %s32, 1
        %p468 = scmp.lt.s32.totalorder %s465, 1
        %s469 = scalar_select %p468, %s465, 1
        %s470 = smul.addr %s467, 4
        %s471 = sadd.s32 %s469, %s470
        %s472 = smul.addr %s471, 8
        %s473 = scalar_lea.vmem %s2, %s472
        %s474 = smul.u32 2, %s33
        %s475 = smul.u32 2, %s33
        %p476 = scmp.lt.s32.totalorder %s32, 1
        %s477 = scalar_select %p476, %s32, 1
        %s478 = smul.addr %s477, 6
        %s479 = smul.addr %s478, 8
        %s480 = scalar_lea.vmem %s10, %s479
        %p481 = scmp.eq.s32.totalorder %s33, 0
        // Predicated region
        $region61: #{tpu_custom_call.1} parent=55 // pred_check
          %p482 = pneg %p481
        $region62: #{tpu_custom_call.1} parent=55 // pred_check_branch
          %484 = sbr.rel (%p482) target = $region64
        $region63: #{tpu_custom_call.1} parent=55 // pred_region
          %vm485 = vcmask 7168
          %486 = vst.msk [vmem:[#allocation2] sm:$0xff] %vm485, -inf
          %487 = vst.msk [vmem:[#allocation2 + $0x8] sm:$0xff] %vm485, -inf
          %488 = vst.msk [vmem:[#allocation2 + $0x10] sm:$0xff] %vm485, -inf
          %489 = vst.msk [vmem:[#allocation2 + $0x18] sm:$0xff] %vm485, -inf
          %490 = vst.msk [vmem:[#allocation2 + $0x20] sm:$0xff] %vm485, -inf
          %491 = vst.msk [vmem:[#allocation2 + $0x28] sm:$0xff] %vm485, -inf
          %492 = vst.msk [vmem:[#allocation3] sm:$0xff] %vm485, 0.0
          %493 = vst.msk [vmem:[#allocation3 + $0x8] sm:$0xff] %vm485, 0.0
          %494 = vst.msk [vmem:[#allocation3 + $0x10] sm:$0xff] %vm485, 0.0
          %495 = vst.msk [vmem:[#allocation3 + $0x18] sm:$0xff] %vm485, 0.0
          %496 = vst.msk [vmem:[#allocation3 + $0x20] sm:$0xff] %vm485, 0.0
          %497 = vst.msk [vmem:[#allocation3 + $0x28] sm:$0xff] %vm485, 0.0
        $region64: #{tpu_custom_call.1} parent=55 // pred_fallthru
          _
        %v498 = vld [vmem:[%s3] sm:$0xff]
        %v499 = vld [vmem:[%s3 + $0x8] sm:$0xff]
        %v500 = vld [vmem:[%s462] sm:$0xff]
        %502 = vset.pattern.permute.xlu0 0
        %503 = vperm.xlu0 %502, %v498
        %v504 = vpop.permute.xlu0 %503
        %507 = vset.pattern.permute.xlu0 0
        %508 = vperm.xlu0 %507, %v499
        %v509 = vpop.permute.xlu0 %508
        %v512 = vlaneseq
        %v513 = vshrl.u32 %v512, 7
        %v514 = vsub.s32 0, %v513
        %v515 = vrot.slane %v500, %v514
        %v516 = vlaneseq
        %v517 = vshrl.u32 %v516, 7
        %v518 = vsub.s32 4, %v517
        %v519 = vrot.slane %v500, %v518
        %v522 = vlaneseq
        %v523 = vshrl.u32 %v522, 7
        %v524 = vsub.s32 0, %v523
        %v525 = vrot.slane %v515, %v524
        %v526 = vlaneseq
        %v527 = vshrl.u32 %v526, 7
        %v528 = vsub.s32 0, %v527
        %v529 = vrot.slane %v519, %v528
        %v530 = vmul.f32 %v504, %v525
        %v531 = vmul.f32 %v504, %v529
        %v532 = vmul.f32 %v509, %v525
        %v533 = vmul.f32 %v509, %v529
        %534 = vset.pattern.permute.xlu0 1
        %535 = vperm.xlu0 %534, %v498
        %v536 = vpop.permute.xlu0 %535
        %538 = vset.pattern.permute.xlu0 1
        %539 = vperm.xlu0 %538, %v499
        %v540 = vpop.permute.xlu0 %539
        %v542 = vlaneseq
        %v543 = vshrl.u32 %v542, 7
        %v544 = vsub.s32 1, %v543
        %v545 = vrot.slane %v500, %v544
        %v546 = vlaneseq
        %v547 = vshrl.u32 %v546, 7
        %v548 = vsub.s32 5, %v547
        %v549 = vrot.slane %v500, %v548
        %v552 = vlaneseq
        %v553 = vshrl.u32 %v552, 7
        %v554 = vsub.s32 1, %v553
        %v555 = vrot.slane %v545, %v554
        %v556 = vlaneseq
        %v557 = vshrl.u32 %v556, 7
        %v558 = vsub.s32 1, %v557
        %v559 = vrot.slane %v549, %v558
        %v560 = vmul.f32 %v536, %v555
        %v561 = vmul.f32 %v536, %v559
        %v562 = vmul.f32 %v540, %v555
        %v563 = vmul.f32 %v540, %v559
        %v564 = vadd.f32 %v530, %v560
        %v565 = vadd.f32 %v531, %v561
        %v566 = vadd.f32 %v532, %v562
        %v567 = vadd.f32 %v533, %v563
        %568 = vset.pattern.permute.xlu0 2
        %569 = vperm.xlu0 %568, %v498
        %v570 = vpop.permute.xlu0 %569
        %572 = vset.pattern.permute.xlu0 2
        %573 = vperm.xlu0 %572, %v499
        %v574 = vpop.permute.xlu0 %573
        %v576 = vlaneseq
        %v577 = vshrl.u32 %v576, 7
        %v578 = vsub.s32 2, %v577
        %v579 = vrot.slane %v500, %v578
        %v580 = vlaneseq
        %v581 = vshrl.u32 %v580, 7
        %v582 = vsub.s32 6, %v581
        %v583 = vrot.slane %v500, %v582
        %v586 = vlaneseq
        %v587 = vshrl.u32 %v586, 7
        %v588 = vsub.s32 2, %v587
        %v589 = vrot.slane %v579, %v588
        %v590 = vlaneseq
        %v591 = vshrl.u32 %v590, 7
        %v592 = vsub.s32 2, %v591
        %v593 = vrot.slane %v583, %v592
        %v594 = vmul.f32 %v570, %v589
        %v595 = vmul.f32 %v570, %v593
        %v596 = vmul.f32 %v574, %v589
        %v597 = vmul.f32 %v574, %v593
        %v598 = vadd.f32 %v564, %v594
        %v599 = vadd.f32 %v565, %v595
        %v600 = vadd.f32 %v566, %v596
        %v601 = vadd.f32 %v567, %v597
        %602 = vset.pattern.permute.xlu0 3
        %603 = vperm.xlu0 %602, %v498
        %v604 = vpop.permute.xlu0 %603
        %606 = vset.pattern.permute.xlu0 3
        %607 = vperm.xlu0 %606, %v499
        %v608 = vpop.permute.xlu0 %607
        %v610 = vlaneseq
        %v611 = vshrl.u32 %v610, 7
        %v612 = vsub.s32 3, %v611
        %v613 = vrot.slane %v500, %v612
        %v614 = vlaneseq
        %v615 = vshrl.u32 %v614, 7
        %v616 = vsub.s32 7, %v615
        %v617 = vrot.slane %v500, %v616
        %v620 = vlaneseq
        %v621 = vshrl.u32 %v620, 7
        %v622 = vsub.s32 3, %v621
        %v623 = vrot.slane %v613, %v622
        %v624 = vlaneseq
        %v625 = vshrl.u32 %v624, 7
        %v626 = vsub.s32 3, %v625
        %v627 = vrot.slane %v617, %v626
        %v628 = vmul.f32 %v604, %v623
        %v629 = vmul.f32 %v604, %v627
        %v630 = vmul.f32 %v608, %v623
        %v631 = vmul.f32 %v608, %v627
        %v632 = vadd.f32 %v598, %v628
        %v633 = vadd.f32 %v599, %v629
        %v634 = vadd.f32 %v600, %v630
        %v635 = vadd.f32 %v601, %v631
        %v636 = vld [vmem:[%s4] sm:$0xff]
        %v637 = vld [vmem:[%s4 + $0x8] sm:$0xff]
        %v638 = vld [vmem:[%s394] sm:$0xff]
        %v639 = vld [vmem:[%s394 + $0x8] sm:$0xff]
        %641 = vset.pattern.permute.xlu0 0
        %642 = vperm.xlu0 %641, %v636
        %v643 = vpop.permute.xlu0 %642
        %646 = vset.pattern.permute.xlu0 0
        %647 = vperm.xlu0 %646, %v637
        %v648 = vpop.permute.xlu0 %647
        %v650 = vlaneseq
        %v651 = vshrl.u32 %v650, 7
        %v652 = vsub.s32 0, %v651
        %v653 = vrot.slane %v638, %v652
        %v654 = vlaneseq
        %v655 = vshrl.u32 %v654, 7
        %v656 = vsub.s32 0, %v655
        %v657 = vrot.slane %v639, %v656
        %v658 = vmul.f32 %v643, %v653
        %v659 = vmul.f32 %v643, %v657
        %v660 = vmul.f32 %v648, %v653
        %v661 = vmul.f32 %v648, %v657
        %662 = vset.pattern.permute.xlu0 1
        %663 = vperm.xlu0 %662, %v636
        %v664 = vpop.permute.xlu0 %663
        %666 = vset.pattern.permute.xlu0 1
        %667 = vperm.xlu0 %666, %v637
        %v668 = vpop.permute.xlu0 %667
        %v670 = vlaneseq
        %v671 = vshrl.u32 %v670, 7
        %v672 = vsub.s32 1, %v671
        %v673 = vrot.slane %v638, %v672
        %v674 = vlaneseq
        %v675 = vshrl.u32 %v674, 7
        %v676 = vsub.s32 1, %v675
        %v677 = vrot.slane %v639, %v676
        %v678 = vmul.f32 %v664, %v673
        %v679 = vmul.f32 %v664, %v677
        %v680 = vmul.f32 %v668, %v673
        %v681 = vmul.f32 %v668, %v677
        %v682 = vadd.f32 %v658, %v678
        %v683 = vadd.f32 %v659, %v679
        %v684 = vadd.f32 %v660, %v680
        %v685 = vadd.f32 %v661, %v681
        %686 = vset.pattern.permute.xlu0 2
        %687 = vperm.xlu0 %686, %v636
        %v688 = vpop.permute.xlu0 %687
        %690 = vset.pattern.permute.xlu0 2
        %691 = vperm.xlu0 %690, %v637
        %v692 = vpop.permute.xlu0 %691
        %v694 = vlaneseq
        %v695 = vshrl.u32 %v694, 7
        %v696 = vsub.s32 2, %v695
        %v697 = vrot.slane %v638, %v696
        %v698 = vlaneseq
        %v699 = vshrl.u32 %v698, 7
        %v700 = vsub.s32 2, %v699
        %v701 = vrot.slane %v639, %v700
        %v702 = vmul.f32 %v688, %v697
        %v703 = vmul.f32 %v688, %v701
        %v704 = vmul.f32 %v692, %v697
        %v705 = vmul.f32 %v692, %v701
        %v706 = vadd.f32 %v682, %v702
        %v707 = vadd.f32 %v683, %v703
        %v708 = vadd.f32 %v684, %v704
        %v709 = vadd.f32 %v685, %v705
        %710 = vset.pattern.permute.xlu0 3
        %711 = vperm.xlu0 %710, %v636
        %v712 = vpop.permute.xlu0 %711
        %714 = vset.pattern.permute.xlu0 3
        %715 = vperm.xlu0 %714, %v637
        %v716 = vpop.permute.xlu0 %715
        %v718 = vlaneseq
        %v719 = vshrl.u32 %v718, 7
        %v720 = vsub.s32 3, %v719
        %v721 = vrot.slane %v638, %v720
        %v722 = vlaneseq
        %v723 = vshrl.u32 %v722, 7
        %v724 = vsub.s32 3, %v723
        %v725 = vrot.slane %v639, %v724
        %v726 = vmul.f32 %v712, %v721
        %v727 = vmul.f32 %v712, %v725
        %v728 = vmul.f32 %v716, %v721
        %v729 = vmul.f32 %v716, %v725
        %v730 = vadd.f32 %v706, %v726
        %v731 = vadd.f32 %v707, %v727
        %v732 = vadd.f32 %v708, %v728
        %v733 = vadd.f32 %v709, %v729
        %734 = vset.pattern.permute.xlu0 4
        %735 = vperm.xlu0 %734, %v636
        %v736 = vpop.permute.xlu0 %735
        %738 = vset.pattern.permute.xlu0 4
        %739 = vperm.xlu0 %738, %v637
        %v740 = vpop.permute.xlu0 %739
        %v742 = vlaneseq
        %v743 = vshrl.u32 %v742, 7
        %v744 = vsub.s32 4, %v743
        %v745 = vrot.slane %v638, %v744
        %v746 = vlaneseq
        %v747 = vshrl.u32 %v746, 7
        %v748 = vsub.s32 4, %v747
        %v749 = vrot.slane %v639, %v748
        %v750 = vmul.f32 %v736, %v745
        %v751 = vmul.f32 %v736, %v749
        %v752 = vmul.f32 %v740, %v745
        %v753 = vmul.f32 %v740, %v749
        %v754 = vadd.f32 %v730, %v750
        %v755 = vadd.f32 %v731, %v751
        %v756 = vadd.f32 %v732, %v752
        %v757 = vadd.f32 %v733, %v753
        %758 = vset.pattern.permute.xlu0 5
        %759 = vperm.xlu0 %758, %v636
        %v760 = vpop.permute.xlu0 %759
        %762 = vset.pattern.permute.xlu0 5
        %763 = vperm.xlu0 %762, %v637
        %v764 = vpop.permute.xlu0 %763
        %v766 = vlaneseq
        %v767 = vshrl.u32 %v766, 7
        %v768 = vsub.s32 5, %v767
        %v769 = vrot.slane %v638, %v768
        %v770 = vlaneseq
        %v771 = vshrl.u32 %v770, 7
        %v772 = vsub.s32 5, %v771
        %v773 = vrot.slane %v639, %v772
        %v774 = vmul.f32 %v760, %v769
        %v775 = vmul.f32 %v760, %v773
        %v776 = vmul.f32 %v764, %v769
        %v777 = vmul.f32 %v764, %v773
        %v778 = vadd.f32 %v754, %v774
        %v779 = vadd.f32 %v755, %v775
        %v780 = vadd.f32 %v756, %v776
        %v781 = vadd.f32 %v757, %v777
        %782 = vset.pattern.permute.xlu0 6
        %783 = vperm.xlu0 %782, %v636
        %v784 = vpop.permute.xlu0 %783
        %786 = vset.pattern.permute.xlu0 6
        %787 = vperm.xlu0 %786, %v637
        %v788 = vpop.permute.xlu0 %787
        %v790 = vlaneseq
        %v791 = vshrl.u32 %v790, 7
        %v792 = vsub.s32 6, %v791
        %v793 = vrot.slane %v638, %v792
        %v794 = vlaneseq
        %v795 = vshrl.u32 %v794, 7
        %v796 = vsub.s32 6, %v795
        %v797 = vrot.slane %v639, %v796
        %v798 = vmul.f32 %v784, %v793
        %v799 = vmul.f32 %v784, %v797
        %v800 = vmul.f32 %v788, %v793
        %v801 = vmul.f32 %v788, %v797
        %v802 = vadd.f32 %v778, %v798
        %v803 = vadd.f32 %v779, %v799
        %v804 = vadd.f32 %v780, %v800
        %v805 = vadd.f32 %v781, %v801
        %806 = vset.pattern.permute.xlu0 7
        %807 = vperm.xlu0 %806, %v636
        %v808 = vpop.permute.xlu0 %807
        %810 = vset.pattern.permute.xlu0 7
        %811 = vperm.xlu0 %810, %v637
        %v812 = vpop.permute.xlu0 %811
        %v814 = vlaneseq
        %v815 = vshrl.u32 %v814, 7
        %v816 = vsub.s32 7, %v815
        %v817 = vrot.slane %v638, %v816
        %v818 = vlaneseq
        %v819 = vshrl.u32 %v818, 7
        %v820 = vsub.s32 7, %v819
        %v821 = vrot.slane %v639, %v820
        %v822 = vmul.f32 %v808, %v817
        %v823 = vmul.f32 %v808, %v821
        %v824 = vmul.f32 %v812, %v817
        %v825 = vmul.f32 %v812, %v821
        %v826 = vadd.f32 %v802, %v822
        %v827 = vadd.f32 %v803, %v823
        %v828 = vadd.f32 %v804, %v824
        %v829 = vadd.f32 %v805, %v825
        %v830 = vld [vmem:[%s5] sm:$0xff]
        %v831 = vld [vmem:[%s5 + $0x8] sm:$0xff]
        %v832 = vld [vmem:[%s473] sm:$0xff]
        %v833 = vld [vmem:[%s473 + $0x8] sm:$0xff]
        %v834 = vld [vmem:[%s473 + $0x10] sm:$0xff]
        %v835 = vld [vmem:[%s473 + $0x18] sm:$0xff]
        %837 = vset.pattern.permute.xlu0 0
        %838 = vperm.xlu0 %837, %v830
        %v839 = vpop.permute.xlu0 %838
        %842 = vset.pattern.permute.xlu0 0
        %843 = vperm.xlu0 %842, %v831
        %v844 = vpop.permute.xlu0 %843
        %v846 = vlaneseq
        %v847 = vshrl.u32 %v846, 7
        %v848 = vsub.s32 0, %v847
        %v849 = vrot.slane %v832, %v848
        %v850 = vlaneseq
        %v851 = vshrl.u32 %v850, 7
        %v852 = vsub.s32 0, %v851
        %v853 = vrot.slane %v833, %v852
        %v854 = vmul.f32 %v839, %v849
        %v855 = vmul.f32 %v839, %v853
        %v856 = vmul.f32 %v844, %v849
        %v857 = vmul.f32 %v844, %v853
        %858 = vset.pattern.permute.xlu0 1
        %859 = vperm.xlu0 %858, %v830
        %v860 = vpop.permute.xlu0 %859
        %862 = vset.pattern.permute.xlu0 1
        %863 = vperm.xlu0 %862, %v831
        %v864 = vpop.permute.xlu0 %863
        %v866 = vlaneseq
        %v867 = vshrl.u32 %v866, 7
        %v868 = vsub.s32 1, %v867
        %v869 = vrot.slane %v832, %v868
        %v870 = vlaneseq
        %v871 = vshrl.u32 %v870, 7
        %v872 = vsub.s32 1, %v871
        %v873 = vrot.slane %v833, %v872
        %v874 = vmul.f32 %v860, %v869
        %v875 = vmul.f32 %v860, %v873
        %v876 = vmul.f32 %v864, %v869
        %v877 = vmul.f32 %v864, %v873
        %v878 = vadd.f32 %v854, %v874
        %v879 = vadd.f32 %v855, %v875
        %v880 = vadd.f32 %v856, %v876
        %v881 = vadd.f32 %v857, %v877
        %882 = vset.pattern.permute.xlu0 2
        %883 = vperm.xlu0 %882, %v830
        %v884 = vpop.permute.xlu0 %883
        %886 = vset.pattern.permute.xlu0 2
        %887 = vperm.xlu0 %886, %v831
        %v888 = vpop.permute.xlu0 %887
        %v890 = vlaneseq
        %v891 = vshrl.u32 %v890, 7
        %v892 = vsub.s32 2, %v891
        %v893 = vrot.slane %v832, %v892
        %v894 = vlaneseq
        %v895 = vshrl.u32 %v894, 7
        %v896 = vsub.s32 2, %v895
        %v897 = vrot.slane %v833, %v896
        %v898 = vmul.f32 %v884, %v893
        %v899 = vmul.f32 %v884, %v897
        %v900 = vmul.f32 %v888, %v893
        %v901 = vmul.f32 %v888, %v897
        %v902 = vadd.f32 %v878, %v898
        %v903 = vadd.f32 %v879, %v899
        %v904 = vadd.f32 %v880, %v900
        %v905 = vadd.f32 %v881, %v901
        %906 = vset.pattern.permute.xlu0 3
        %907 = vperm.xlu0 %906, %v830
        %v908 = vpop.permute.xlu0 %907
        %910 = vset.pattern.permute.xlu0 3
        %911 = vperm.xlu0 %910, %v831
        %v912 = vpop.permute.xlu0 %911
        %v914 = vlaneseq
        %v915 = vshrl.u32 %v914, 7
        %v916 = vsub.s32 3, %v915
        %v917 = vrot.slane %v832, %v916
        %v918 = vlaneseq
        %v919 = vshrl.u32 %v918, 7
        %v920 = vsub.s32 3, %v919
        %v921 = vrot.slane %v833, %v920
        %v922 = vmul.f32 %v908, %v917
        %v923 = vmul.f32 %v908, %v921
        %v924 = vmul.f32 %v912, %v917
        %v925 = vmul.f32 %v912, %v921
        %v926 = vadd.f32 %v902, %v922
        %v927 = vadd.f32 %v903, %v923
        %v928 = vadd.f32 %v904, %v924
        %v929 = vadd.f32 %v905, %v925
        %930 = vset.pattern.permute.xlu0 4
        %931 = vperm.xlu0 %930, %v830
        %v932 = vpop.permute.xlu0 %931
        %934 = vset.pattern.permute.xlu0 4
        %935 = vperm.xlu0 %934, %v831
        %v936 = vpop.permute.xlu0 %935
        %v938 = vlaneseq
        %v939 = vshrl.u32 %v938, 7
        %v940 = vsub.s32 4, %v939
        %v941 = vrot.slane %v832, %v940
        %v942 = vlaneseq
        %v943 = vshrl.u32 %v942, 7
        %v944 = vsub.s32 4, %v943
        %v945 = vrot.slane %v833, %v944
        %v946 = vmul.f32 %v932, %v941
        %v947 = vmul.f32 %v932, %v945
        %v948 = vmul.f32 %v936, %v941
        %v949 = vmul.f32 %v936, %v945
        %v950 = vadd.f32 %v926, %v946
        %v951 = vadd.f32 %v927, %v947
        %v952 = vadd.f32 %v928, %v948
        %v953 = vadd.f32 %v929, %v949
        %954 = vset.pattern.permute.xlu0 5
        %955 = vperm.xlu0 %954, %v830
        %v956 = vpop.permute.xlu0 %955
        %958 = vset.pattern.permute.xlu0 5
        %959 = vperm.xlu0 %958, %v831
        %v960 = vpop.permute.xlu0 %959
        %v962 = vlaneseq
        %v963 = vshrl.u32 %v962, 7
        %v964 = vsub.s32 5, %v963
        %v965 = vrot.slane %v832, %v964
        %v966 = vlaneseq
        %v967 = vshrl.u32 %v966, 7
        %v968 = vsub.s32 5, %v967
        %v969 = vrot.slane %v833, %v968
        %v970 = vmul.f32 %v956, %v965
        %v971 = vmul.f32 %v956, %v969
        %v972 = vmul.f32 %v960, %v965
        %v973 = vmul.f32 %v960, %v969
        %v974 = vadd.f32 %v950, %v970
        %v975 = vadd.f32 %v951, %v971
        %v976 = vadd.f32 %v952, %v972
        %v977 = vadd.f32 %v953, %v973
        %978 = vset.pattern.permute.xlu0 6
        %979 = vperm.xlu0 %978, %v830
        %v980 = vpop.permute.xlu0 %979
        %982 = vset.pattern.permute.xlu0 6
        %983 = vperm.xlu0 %982, %v831
        %v984 = vpop.permute.xlu0 %983
        %v986 = vlaneseq
        %v987 = vshrl.u32 %v986, 7
        %v988 = vsub.s32 6, %v987
        %v989 = vrot.slane %v832, %v988
        %v990 = vlaneseq
        %v991 = vshrl.u32 %v990, 7
        %v992 = vsub.s32 6, %v991
        %v993 = vrot.slane %v833, %v992
        %v994 = vmul.f32 %v980, %v989
        %v995 = vmul.f32 %v980, %v993
        %v996 = vmul.f32 %v984, %v989
        %v997 = vmul.f32 %v984, %v993
        %v998 = vadd.f32 %v974, %v994
        %v999 = vadd.f32 %v975, %v995
        %v1000 = vadd.f32 %v976, %v996
        %v1001 = vadd.f32 %v977, %v997
        %1002 = vset.pattern.permute.xlu0 7
        %1003 = vperm.xlu0 %1002, %v830
        %v1004 = vpop.permute.xlu0 %1003
        %1006 = vset.pattern.permute.xlu0 7
        %1007 = vperm.xlu0 %1006, %v831
        %v1008 = vpop.permute.xlu0 %1007
        %v1010 = vlaneseq
        %v1011 = vshrl.u32 %v1010, 7
        %v1012 = vsub.s32 7, %v1011
        %v1013 = vrot.slane %v832, %v1012
        %v1014 = vlaneseq
        %v1015 = vshrl.u32 %v1014, 7
        %v1016 = vsub.s32 7, %v1015
        %v1017 = vrot.slane %v833, %v1016
        %v1018 = vmul.f32 %v1004, %v1013
        %v1019 = vmul.f32 %v1004, %v1017
        %v1020 = vmul.f32 %v1008, %v1013
        %v1021 = vmul.f32 %v1008, %v1017
        %v1022 = vadd.f32 %v998, %v1018
        %v1023 = vadd.f32 %v999, %v1019
        %v1024 = vadd.f32 %v1000, %v1020
        %v1025 = vadd.f32 %v1001, %v1021
        %1026 = vset.pattern.permute.xlu0 8
        %1027 = vperm.xlu0 %1026, %v830
        %v1028 = vpop.permute.xlu0 %1027
        %1030 = vset.pattern.permute.xlu0 8
        %1031 = vperm.xlu0 %1030, %v831
        %v1032 = vpop.permute.xlu0 %1031
        %v1034 = vlaneseq
        %v1035 = vshrl.u32 %v1034, 7
        %v1036 = vsub.s32 0, %v1035
        %v1037 = vrot.slane %v834, %v1036
        %v1038 = vlaneseq
        %v1039 = vshrl.u32 %v1038, 7
        %v1040 = vsub.s32 0, %v1039
        %v1041 = vrot.slane %v835, %v1040
        %v1042 = vmul.f32 %v1028, %v1037
        %v1043 = vmul.f32 %v1028, %v1041
        %v1044 = vmul.f32 %v1032, %v1037
        %v1045 = vmul.f32 %v1032, %v1041
        %v1046 = vadd.f32 %v1022, %v1042
        %v1047 = vadd.f32 %v1023, %v1043
        %v1048 = vadd.f32 %v1024, %v1044
        %v1049 = vadd.f32 %v1025, %v1045
        %1050 = vset.pattern.permute.xlu0 9
        %1051 = vperm.xlu0 %1050, %v830
        %v1052 = vpop.permute.xlu0 %1051
        %1054 = vset.pattern.permute.xlu0 9
        %1055 = vperm.xlu0 %1054, %v831
        %v1056 = vpop.permute.xlu0 %1055
        %v1058 = vlaneseq
        %v1059 = vshrl.u32 %v1058, 7
        %v1060 = vsub.s32 1, %v1059
        %v1061 = vrot.slane %v834, %v1060
        %v1062 = vlaneseq
        %v1063 = vshrl.u32 %v1062, 7
        %v1064 = vsub.s32 1, %v1063
        %v1065 = vrot.slane %v835, %v1064
        %v1066 = vmul.f32 %v1052, %v1061
        %v1067 = vmul.f32 %v1052, %v1065
        %v1068 = vmul.f32 %v1056, %v1061
        %v1069 = vmul.f32 %v1056, %v1065
        %v1070 = vadd.f32 %v1046, %v1066
        %v1071 = vadd.f32 %v1047, %v1067
        %v1072 = vadd.f32 %v1048, %v1068
        %v1073 = vadd.f32 %v1049, %v1069
        %1074 = vset.pattern.permute.xlu0 10
        %1075 = vperm.xlu0 %1074, %v830
        %v1076 = vpop.permute.xlu0 %1075
        %1078 = vset.pattern.permute.xlu0 10
        %1079 = vperm.xlu0 %1078, %v831
        %v1080 = vpop.permute.xlu0 %1079
        %v1082 = vlaneseq
        %v1083 = vshrl.u32 %v1082, 7
        %v1084 = vsub.s32 2, %v1083
        %v1085 = vrot.slane %v834, %v1084
        %v1086 = vlaneseq
        %v1087 = vshrl.u32 %v1086, 7
        %v1088 = vsub.s32 2, %v1087
        %v1089 = vrot.slane %v835, %v1088
        %v1090 = vmul.f32 %v1076, %v1085
        %v1091 = vmul.f32 %v1076, %v1089
        %v1092 = vmul.f32 %v1080, %v1085
        %v1093 = vmul.f32 %v1080, %v1089
        %v1094 = vadd.f32 %v1070, %v1090
        %v1095 = vadd.f32 %v1071, %v1091
        %v1096 = vadd.f32 %v1072, %v1092
        %v1097 = vadd.f32 %v1073, %v1093
        %1098 = vset.pattern.permute.xlu0 11
        %1099 = vperm.xlu0 %1098, %v830
        %v1100 = vpop.permute.xlu0 %1099
        %1102 = vset.pattern.permute.xlu0 11
        %1103 = vperm.xlu0 %1102, %v831
        %v1104 = vpop.permute.xlu0 %1103
        %v1106 = vlaneseq
        %v1107 = vshrl.u32 %v1106, 7
        %v1108 = vsub.s32 3, %v1107
        %v1109 = vrot.slane %v834, %v1108
        %v1110 = vlaneseq
        %v1111 = vshrl.u32 %v1110, 7
        %v1112 = vsub.s32 3, %v1111
        %v1113 = vrot.slane %v835, %v1112
        %v1114 = vmul.f32 %v1100, %v1109
        %v1115 = vmul.f32 %v1100, %v1113
        %v1116 = vmul.f32 %v1104, %v1109
        %v1117 = vmul.f32 %v1104, %v1113
        %v1118 = vadd.f32 %v1094, %v1114
        %v1119 = vadd.f32 %v1095, %v1115
        %v1120 = vadd.f32 %v1096, %v1116
        %v1121 = vadd.f32 %v1097, %v1117
        %1122 = vset.pattern.permute.xlu0 12
        %1123 = vperm.xlu0 %1122, %v830
        %v1124 = vpop.permute.xlu0 %1123
        %1126 = vset.pattern.permute.xlu0 12
        %1127 = vperm.xlu0 %1126, %v831
        %v1128 = vpop.permute.xlu0 %1127
        %v1130 = vlaneseq
        %v1131 = vshrl.u32 %v1130, 7
        %v1132 = vsub.s32 4, %v1131
        %v1133 = vrot.slane %v834, %v1132
        %v1134 = vlaneseq
        %v1135 = vshrl.u32 %v1134, 7
        %v1136 = vsub.s32 4, %v1135
        %v1137 = vrot.slane %v835, %v1136
        %v1138 = vmul.f32 %v1124, %v1133
        %v1139 = vmul.f32 %v1124, %v1137
        %v1140 = vmul.f32 %v1128, %v1133
        %v1141 = vmul.f32 %v1128, %v1137
        %v1142 = vadd.f32 %v1118, %v1138
        %v1143 = vadd.f32 %v1119, %v1139
        %v1144 = vadd.f32 %v1120, %v1140
        %v1145 = vadd.f32 %v1121, %v1141
        %1146 = vset.pattern.permute.xlu0 13
        %1147 = vperm.xlu0 %1146, %v830
        %v1148 = vpop.permute.xlu0 %1147
        %1150 = vset.pattern.permute.xlu0 13
        %1151 = vperm.xlu0 %1150, %v831
        %v1152 = vpop.permute.xlu0 %1151
        %v1154 = vlaneseq
        %v1155 = vshrl.u32 %v1154, 7
        %v1156 = vsub.s32 5, %v1155
        %v1157 = vrot.slane %v834, %v1156
        %v1158 = vlaneseq
        %v1159 = vshrl.u32 %v1158, 7
        %v1160 = vsub.s32 5, %v1159
        %v1161 = vrot.slane %v835, %v1160
        %v1162 = vmul.f32 %v1148, %v1157
        %v1163 = vmul.f32 %v1148, %v1161
        %v1164 = vmul.f32 %v1152, %v1157
        %v1165 = vmul.f32 %v1152, %v1161
        %v1166 = vadd.f32 %v1142, %v1162
        %v1167 = vadd.f32 %v1143, %v1163
        %v1168 = vadd.f32 %v1144, %v1164
        %v1169 = vadd.f32 %v1145, %v1165
        %1170 = vset.pattern.permute.xlu0 14
        %1171 = vperm.xlu0 %1170, %v830
        %v1172 = vpop.permute.xlu0 %1171
        %1174 = vset.pattern.permute.xlu0 14
        %1175 = vperm.xlu0 %1174, %v831
        %v1176 = vpop.permute.xlu0 %1175
        %v1178 = vlaneseq
        %v1179 = vshrl.u32 %v1178, 7
        %v1180 = vsub.s32 6, %v1179
        %v1181 = vrot.slane %v834, %v1180
        %v1182 = vlaneseq
        %v1183 = vshrl.u32 %v1182, 7
        %v1184 = vsub.s32 6, %v1183
        %v1185 = vrot.slane %v835, %v1184
        %v1186 = vmul.f32 %v1172, %v1181
        %v1187 = vmul.f32 %v1172, %v1185
        %v1188 = vmul.f32 %v1176, %v1181
        %v1189 = vmul.f32 %v1176, %v1185
        %v1190 = vadd.f32 %v1166, %v1186
        %v1191 = vadd.f32 %v1167, %v1187
        %v1192 = vadd.f32 %v1168, %v1188
        %v1193 = vadd.f32 %v1169, %v1189
        %1194 = vset.pattern.permute.xlu0 15
        %1195 = vperm.xlu0 %1194, %v830
        %v1196 = vpop.permute.xlu0 %1195
        %1198 = vset.pattern.permute.xlu0 15
        %1199 = vperm.xlu0 %1198, %v831
        %v1200 = vpop.permute.xlu0 %1199
        %v1202 = vlaneseq
        %v1203 = vshrl.u32 %v1202, 7
        %v1204 = vsub.s32 7, %v1203
        %v1205 = vrot.slane %v834, %v1204
        %v1206 = vlaneseq
        %v1207 = vshrl.u32 %v1206, 7
        %v1208 = vsub.s32 7, %v1207
        %v1209 = vrot.slane %v835, %v1208
        %v1210 = vmul.f32 %v1196, %v1205
        %v1211 = vmul.f32 %v1196, %v1209
        %v1212 = vmul.f32 %v1200, %v1205
        %v1213 = vmul.f32 %v1200, %v1209
        %v1214 = vadd.f32 %v1190, %v1210
        %v1215 = vadd.f32 %v1191, %v1211
        %v1216 = vadd.f32 %v1192, %v1212
        %v1217 = vadd.f32 %v1193, %v1213
        %v1218 = vld [vmem:[%s6] sm:$0xff]
        %v1219 = vld [vmem:[%s6 + $0x8] sm:$0xff]
        %v1220 = vld [vmem:[%s6 + $0x10] sm:$0xff]
        %v1221 = vld [vmem:[%s6 + $0x18] sm:$0xff]
        %v1222 = vld [vmem:[%s6 + $0x20] sm:$0xff]
        %v1223 = vld [vmem:[%s6 + $0x28] sm:$0xff]
        %1225 = vset.pattern.permute.xlu0 0
        %1226 = vperm.xlu0 %1225, %v1218
        %v1227 = vpop.permute.xlu0 %1226
        %1230 = vset.pattern.permute.xlu0 0
        %1231 = vperm.xlu0 %1230, %v1219
        %v1232 = vpop.permute.xlu0 %1231
        %1235 = vset.pattern.permute.xlu0 0
        %1236 = vperm.xlu0 %1235, %v1220
        %v1237 = vpop.permute.xlu0 %1236
        %1240 = vset.pattern.permute.xlu0 0
        %1241 = vperm.xlu0 %1240, %v1221
        %v1242 = vpop.permute.xlu0 %1241
        %1245 = vset.pattern.permute.xlu0 0
        %1246 = vperm.xlu0 %1245, %v1222
        %v1247 = vpop.permute.xlu0 %1246
        %1250 = vset.pattern.permute.xlu0 0
        %1251 = vperm.xlu0 %1250, %v1223
        %v1252 = vpop.permute.xlu0 %1251
        %v1254 = vadd.f32 %v632, %v1227
        %v1255 = vadd.f32 %v633, %v1227
        %v1256 = vadd.f32 %v634, %v1232
        %v1257 = vadd.f32 %v635, %v1232
        %v1258 = vadd.f32 %v826, %v1237
        %v1259 = vadd.f32 %v827, %v1237
        %v1260 = vadd.f32 %v828, %v1242
        %v1261 = vadd.f32 %v829, %v1242
        %v1262 = vadd.f32 %v1214, %v1247
        %v1263 = vadd.f32 %v1215, %v1247
        %v1264 = vadd.f32 %v1216, %v1252
        %v1265 = vadd.f32 %v1217, %v1252
        %1266 = vst [vmem:[%s446] sm:$0xff] %v1254
        %1267 = vst [vmem:[%s446 + $0x8] sm:$0xff] %v1255
        %1268 = vst [vmem:[%s446 + $0x10] sm:$0xff] %v1256
        %1269 = vst [vmem:[%s446 + $0x18] sm:$0xff] %v1257
        %1270 = vst [vmem:[%s446 + $0x20] sm:$0xff] %v1258
        %1271 = vst [vmem:[%s446 + $0x28] sm:$0xff] %v1259
        %1272 = vst [vmem:[%s446 + $0x30] sm:$0xff] %v1260
        %1273 = vst [vmem:[%s446 + $0x38] sm:$0xff] %v1261
        %1274 = vst [vmem:[%s446 + $0x40] sm:$0xff] %v1262
        %1275 = vst [vmem:[%s446 + $0x48] sm:$0xff] %v1263
        %1276 = vst [vmem:[%s446 + $0x50] sm:$0xff] %v1264
        %1277 = vst [vmem:[%s446 + $0x58] sm:$0xff] %v1265
        %v1278 = vlaneseq
        %v1279 = vand.u32 %v1278, 127
        %v1280 = vadd.s32 %v1279, 128
        %s1281 = smul.u32 %s33, 256
        %v1282 = vstv %s1281
        %v1283 = vadd.s32 %v1282, %v1279
        %v1284 = vadd.s32 %v1282, %v1280
        %vm1285 = vcmp.lt.s32.totalorder %v1283, 256
        %vm1286 = vcmp.lt.s32.totalorder %v1284, 256
        %v1287 = vld [vmem:[#allocation2] sm:$0xff]
        %v1288 = vld [vmem:[#allocation2 + $0x8] sm:$0xff]
        %v1289 = vld [vmem:[#allocation2 + $0x10] sm:$0xff]
        %v1290 = vld [vmem:[#allocation2 + $0x18] sm:$0xff]
        %v1291 = vld [vmem:[#allocation2 + $0x20] sm:$0xff]
        %v1292 = vld [vmem:[#allocation2 + $0x28] sm:$0xff]
        %v1293 = vsel %vm1285, %v1254, -inf
        %v1294 = vsel %vm1286, %v1255, -inf
        %v1295 = vsel %vm1285, %v1256, -inf
        %v1296 = vsel %vm1286, %v1257, -inf
        %v1297 = vsel %vm1285, %v1258, -inf
        %v1298 = vsel %vm1286, %v1259, -inf
        %v1299 = vsel %vm1285, %v1260, -inf
        %v1300 = vsel %vm1286, %v1261, -inf
        %v1301 = vsel %vm1285, %v1262, -inf
        %v1302 = vsel %vm1286, %v1263, -inf
        %v1303 = vsel %vm1285, %v1264, -inf
        %v1304 = vsel %vm1286, %v1265, -inf
        %v1305 = vmax.f32 %v1293, %v1294
        %1306 = vmax.xlane.f32.xlu0 %v1305
        %v1307 = vpop.xlane.xlu0 %1306
        %v1308 = vmax.f32 %v1295, %v1296
        %1309 = vmax.xlane.f32.xlu0 %v1308
        %v1310 = vpop.xlane.xlu0 %1309
        %v1311 = vmax.f32 %v1297, %v1298
        %1312 = vmax.xlane.f32.xlu0 %v1311
        %v1313 = vpop.xlane.xlu0 %1312
        %v1314 = vmax.f32 %v1299, %v1300
        %1315 = vmax.xlane.f32.xlu0 %v1314
        %v1316 = vpop.xlane.xlu0 %1315
        %v1317 = vmax.f32 %v1301, %v1302
        %1318 = vmax.xlane.f32.xlu0 %v1317
        %v1319 = vpop.xlane.xlu0 %1318
        %v1320 = vmax.f32 %v1303, %v1304
        %1321 = vmax.xlane.f32.xlu0 %v1320
        %v1322 = vpop.xlane.xlu0 %1321
        %v1323 = vmax.f32 %v1287, %v1307
        %v1324 = vmax.f32 %v1288, %v1310
        %v1325 = vmax.f32 %v1289, %v1313
        %v1326 = vmax.f32 %v1290, %v1316
        %v1327 = vmax.f32 %v1291, %v1319
        %v1328 = vmax.f32 %v1292, %v1322
        %vm1329 = vcmask 7168
        %1330 = vst.msk [vmem:[#allocation2] sm:$0xff] %vm1329, %v1323
        %1331 = vst.msk [vmem:[#allocation2 + $0x8] sm:$0xff] %vm1329, %v1324
        %1332 = vst.msk [vmem:[#allocation2 + $0x10] sm:$0xff] %vm1329, %v1325
        %1333 = vst.msk [vmem:[#allocation2 + $0x18] sm:$0xff] %vm1329, %v1326
        %1334 = vst.msk [vmem:[#allocation2 + $0x20] sm:$0xff] %vm1329, %v1327
        %1335 = vst.msk [vmem:[#allocation2 + $0x28] sm:$0xff] %vm1329, %v1328
        %v1336 = vld [vmem:[#allocation3] sm:$0xff]
        %v1337 = vld [vmem:[#allocation3 + $0x8] sm:$0xff]
        %v1338 = vld [vmem:[#allocation3 + $0x10] sm:$0xff]
        %v1339 = vld [vmem:[#allocation3 + $0x18] sm:$0xff]
        %v1340 = vld [vmem:[#allocation3 + $0x20] sm:$0xff]
        %v1341 = vld [vmem:[#allocation3 + $0x28] sm:$0xff]
        %v1342 = vsel %vm1285, %v1254, 0.0
        %v1343 = vsel %vm1286, %v1255, 0.0
        %v1344 = vsel %vm1285, %v1256, 0.0
        %v1345 = vsel %vm1286, %v1257, 0.0
        %v1346 = vsel %vm1285, %v1258, 0.0
        %v1347 = vsel %vm1286, %v1259, 0.0
        %v1348 = vsel %vm1285, %v1260, 0.0
        %v1349 = vsel %vm1286, %v1261, 0.0
        %v1350 = vsel %vm1285, %v1262, 0.0
        %v1351 = vsel %vm1286, %v1263, 0.0
        %v1352 = vsel %vm1285, %v1264, 0.0
        %v1353 = vsel %vm1286, %v1265, 0.0
        %v1354 = vadd.f32 %v1342, %v1343
        %1355 = vadd.xlane.f32.xlu0 %v1354
        %v1356 = vpop.xlane.xlu0 %1355
        %v1357 = vadd.f32 %v1344, %v1345
        %1358 = vadd.xlane.f32.xlu0 %v1357
        %v1359 = vpop.xlane.xlu0 %1358
        %v1360 = vadd.f32 %v1346, %v1347
        %1361 = vadd.xlane.f32.xlu0 %v1360
        %v1362 = vpop.xlane.xlu0 %1361
        %v1363 = vadd.f32 %v1348, %v1349
        %1364 = vadd.xlane.f32.xlu0 %v1363
        %v1365 = vpop.xlane.xlu0 %1364
        %v1366 = vadd.f32 %v1350, %v1351
        %1367 = vadd.xlane.f32.xlu0 %v1366
        %v1368 = vpop.xlane.xlu0 %1367
        %v1369 = vadd.f32 %v1352, %v1353
        %1370 = vadd.xlane.f32.xlu0 %v1369
        %v1371 = vpop.xlane.xlu0 %1370
        %v1372 = vadd.f32 %v1336, %v1356
        %v1373 = vadd.f32 %v1337, %v1359
        %v1374 = vadd.f32 %v1338, %v1362
        %v1375 = vadd.f32 %v1339, %v1365
        %v1376 = vadd.f32 %v1340, %v1368
        %v1377 = vadd.f32 %v1341, %v1371
        %1378 = vst.msk [vmem:[#allocation3] sm:$0xff] %vm1329, %v1372
        %1379 = vst.msk [vmem:[#allocation3 + $0x8] sm:$0xff] %vm1329, %v1373
        %1380 = vst.msk [vmem:[#allocation3 + $0x10] sm:$0xff] %vm1329, %v1374
        %1381 = vst.msk [vmem:[#allocation3 + $0x18] sm:$0xff] %vm1329, %v1375
        %1382 = vst.msk [vmem:[#allocation3 + $0x20] sm:$0xff] %vm1329, %v1376
        %1383 = vst.msk [vmem:[#allocation3 + $0x28] sm:$0xff] %vm1329, %v1377
        // Predicated region
        $region65: #{tpu_custom_call.1} parent=55 // pred_check
          %p1384 = pneg %p481
        $region66: #{tpu_custom_call.1} parent=55 // pred_check_branch
          %1386 = sbr.rel (%p1384) target = $region68
        $region67: #{tpu_custom_call.1} parent=55 // pred_region
          %v1387 = vld [vmem:[#allocation2] sm:$0xff]
          %v1388 = vld [vmem:[#allocation2 + $0x8] sm:$0xff]
          %v1389 = vld [vmem:[#allocation2 + $0x10] sm:$0xff]
          %v1390 = vld [vmem:[#allocation2 + $0x18] sm:$0xff]
          %v1391 = vld [vmem:[#allocation2 + $0x20] sm:$0xff]
          %v1392 = vld [vmem:[#allocation2 + $0x28] sm:$0xff]
          %v1393 = vld [vmem:[#allocation3] sm:$0xff]
          %v1394 = vld [vmem:[#allocation3 + $0x8] sm:$0xff]
          %v1395 = vld [vmem:[#allocation3 + $0x10] sm:$0xff]
          %v1396 = vld [vmem:[#allocation3 + $0x18] sm:$0xff]
          %v1397 = vld [vmem:[#allocation3 + $0x20] sm:$0xff]
          %v1398 = vld [vmem:[#allocation3 + $0x28] sm:$0xff]
          %v1399 = vmul.f32 %v1393, 0.00390625
          %v1400 = vmul.f32 %v1394, 0.00390625
          %v1401 = vmul.f32 %v1395, 0.00390625
          %v1402 = vmul.f32 %v1396, 0.00390625
          %v1403 = vmul.f32 %v1397, 0.00390625
          %v1404 = vmul.f32 %v1398, 0.00390625
          %v1405 = vld [vmem:[%s7] sm:$0xff]
          %v1406 = vld [vmem:[%s7 + $0x8] sm:$0xff]
          %v1407 = vld [vmem:[%s7 + $0x10] sm:$0xff]
          %v1408 = vld [vmem:[%s7 + $0x18] sm:$0xff]
          %v1409 = vld [vmem:[%s7 + $0x20] sm:$0xff]
          %v1410 = vld [vmem:[%s7 + $0x28] sm:$0xff]
          %v1411 = vld [vmem:[%s8] sm:$0xff]
          %v1412 = vld [vmem:[%s8 + $0x8] sm:$0xff]
          %v1413 = vld [vmem:[%s8 + $0x10] sm:$0xff]
          %v1414 = vld [vmem:[%s8 + $0x18] sm:$0xff]
          %v1415 = vld [vmem:[%s8 + $0x20] sm:$0xff]
          %v1416 = vld [vmem:[%s8 + $0x28] sm:$0xff]
          %vm1417 = vcmask 392192
          %v1419 = vsel %vm1417, %v1405, 0
          %v1422 = vsel %vm1417, %v1406, 0
          %v1425 = vsel %vm1417, %v1407, 0
          %v1428 = vsel %vm1417, %v1408, 0
          %v1431 = vsel %vm1417, %v1409, 0
          %v1434 = vsel %vm1417, %v1410, 0
          %1436 = vmatprep.subr.mxu0 0.0
          %1437 = vmatpush1.msra.mxu0 0.0
          %1438 = vmatprep.subr.mxu0 0.0
          %1439 = vmatpush1.msra.mxu0 0.0
          %1440 = vmatprep.subr.mxu0 0.0
          %1441 = vmatpush1.msra.mxu0 0.0
          %1442 = vmatprep.subr.mxu0 0.0
          %1443 = vmatpush1.msra.mxu0 0.0
          %1444 = vmatprep.subr.mxu0 0.0
          %1445 = vmatpush1.msra.mxu0 0.0
          %1446 = vmatprep.subr.mxu0 0.0
          %1447 = vmatpush1.msra.mxu0 0.0
          %1448 = vmatprep.subr.mxu0 0.0
          %1449 = vmatpush1.msra.mxu0 0.0
          %1450 = vmatprep.subr.mxu0 0.0
          %1451 = vmatpush1.msra.mxu0 0.0
          %1452 = vmatprep.subr.mxu0 0.0
          %1453 = vmatpush1.msra.mxu0 0.0
          %1454 = vmatprep.subr.mxu0 0.0
          %1455 = vmatpush1.msra.mxu0 0.0
          %1456 = vmatprep.subr.mxu0 0.0
          %1457 = vmatpush1.msra.mxu0 %v1392
          %1458 = vmatprep.subr.mxu0 0.0
          %1459 = vmatpush1.msra.mxu0 %v1391
          %1460 = vmatprep.subr.mxu0 0.0
          %1461 = vmatpush1.msra.mxu0 %v1390
          %1462 = vmatprep.subr.mxu0 0.0
          %1463 = vmatpush1.msra.mxu0 %v1389
          %1464 = vmatprep.subr.mxu0 0.0
          %1465 = vmatpush1.msra.mxu0 %v1388
          %1466 = vmatprep.subr.mxu0 0.0
          %1467 = vmatpush1.msra.mxu0 %v1387
          %1468 = vmatprep.subr.mxu0 0.0
          %1469 = vmatpush2.msra.mxu0 0.0
          %1470 = vmatprep.subr.mxu0 0.0
          %1471 = vmatpush2.msra.mxu0 0.0
          %1472 = vmatprep.subr.mxu0 0.0
          %1473 = vmatpush2.msra.mxu0 0.0
          %1474 = vmatprep.subr.mxu0 0.0
          %1475 = vmatpush2.msra.mxu0 0.0
          %1476 = vmatprep.subr.mxu0 0.0
          %1477 = vmatpush2.msra.mxu0 0.0
          %1478 = vmatprep.subr.mxu0 0.0
          %1479 = vmatpush2.msra.mxu0 0.0
          %1480 = vmatprep.subr.mxu0 0.0
          %1481 = vmatpush2.msra.mxu0 0.0
          %1482 = vmatprep.subr.mxu0 0.0
          %1483 = vmatpush2.msra.mxu0 0.0
          %1484 = vmatprep.subr.mxu0 0.0
          %1485 = vmatpush2.msra.mxu0 0.0
          %1486 = vmatprep.subr.mxu0 0.0
          %1487 = vmatpush2.msra.mxu0 0.0
          %1488 = vmatprep.subr.mxu0 0.0
          %1489 = vmatpush2.msra.mxu0 0.0
          %1490 = vmatprep.subr.mxu0 0.0
          %1491 = vmatpush2.msra.mxu0 0.0
          %1492 = vmatprep.subr.mxu0 0.0
          %1493 = vmatpush2.msra.mxu0 0.0
          %1494 = vmatprep.subr.mxu0 0.0
          %1495 = vmatpush2.msra.mxu0 0.0
          %1496 = vmatprep.subr.mxu0 0.0
          %1497 = vmatpush2.msra.mxu0 0.0
          %1498 = vmatprep.subr.mxu0 0.0
          %1499 = vmatpush2.msra.mxu0 0.0
          %1500 = vmatprep.mubr.f32.mxu0 0.0
          %1501 = vmatmul.mubr.f32.gmra.mxu0 %v1419
          %v1502 = vpop.f32.mrf.mxu0
          %v1503 = vadd.f32 %v1411, %v1502
          %v1504 = vpop.f32.mrf.mxu0
          %1505 = vmatprep.mubr.f32.mxu0 0.0
          %1506 = vmatmul.mubr.f32.gmra.mxu0 %v1422
          %v1507 = vpop.f32.mrf.mxu0
          %v1508 = vadd.f32 %v1412, %v1507
          %v1509 = vpop.f32.mrf.mxu0
          %1510 = vmatprep.mubr.f32.mxu0 0.0
          %1511 = vmatmul.mubr.f32.gmra.mxu0 %v1425
          %v1512 = vpop.f32.mrf.mxu0
          %v1513 = vadd.f32 %v1413, %v1512
          %v1514 = vpop.f32.mrf.mxu0
          %1515 = vmatprep.mubr.f32.mxu0 0.0
          %1516 = vmatmul.mubr.f32.gmra.mxu0 %v1428
          %v1517 = vpop.f32.mrf.mxu0
          %v1518 = vadd.f32 %v1414, %v1517
          %v1519 = vpop.f32.mrf.mxu0
          %1520 = vmatprep.mubr.f32.mxu0 0.0
          %1521 = vmatmul.mubr.f32.gmra.mxu0 %v1431
          %v1522 = vpop.f32.mrf.mxu0
          %v1523 = vadd.f32 %v1415, %v1522
          %v1524 = vpop.f32.mrf.mxu0
          %1525 = vmatprep.mubr.f32.mxu0 0.0
          %1526 = vmatmul.mubr.f32.gmra.mxu0 %v1434
          %v1527 = vpop.f32.mrf.mxu0
          %v1528 = vadd.f32 %v1416, %v1527
          %v1529 = vpop.f32.mrf.mxu0
          %1530 = vdwg.mxu0
          %1531 = vmatprep.subr.mxu0 0.0
          %1532 = vmatpush1.msra.mxu0 0.0
          %1533 = vmatprep.subr.mxu0 0.0
          %1534 = vmatpush1.msra.mxu0 0.0
          %1535 = vmatprep.subr.mxu0 0.0
          %1536 = vmatpush1.msra.mxu0 0.0
          %1537 = vmatprep.subr.mxu0 0.0
          %1538 = vmatpush1.msra.mxu0 0.0
          %1539 = vmatprep.subr.mxu0 0.0
          %1540 = vmatpush1.msra.mxu0 0.0
          %1541 = vmatprep.subr.mxu0 0.0
          %1542 = vmatpush1.msra.mxu0 0.0
          %1543 = vmatprep.subr.mxu0 0.0
          %1544 = vmatpush1.msra.mxu0 0.0
          %1545 = vmatprep.subr.mxu0 0.0
          %1546 = vmatpush1.msra.mxu0 0.0
          %1547 = vmatprep.subr.mxu0 0.0
          %1548 = vmatpush1.msra.mxu0 0.0
          %1549 = vmatprep.subr.mxu0 0.0
          %1550 = vmatpush1.msra.mxu0 0.0
          %1551 = vmatprep.subr.mxu0 0.0
          %1552 = vmatpush1.msra.mxu0 %v1404
          %1553 = vmatprep.subr.mxu0 0.0
          %1554 = vmatpush1.msra.mxu0 %v1403
          %1555 = vmatprep.subr.mxu0 0.0
          %1556 = vmatpush1.msra.mxu0 %v1402
          %1557 = vmatprep.subr.mxu0 0.0
          %1558 = vmatpush1.msra.mxu0 %v1401
          %1559 = vmatprep.subr.mxu0 0.0
          %1560 = vmatpush1.msra.mxu0 %v1400
          %1561 = vmatprep.subr.mxu0 0.0
          %1562 = vmatpush1.msra.mxu0 %v1399
          %1563 = vmatprep.subr.mxu0 0.0
          %1564 = vmatpush2.msra.mxu0 0.0
          %1565 = vmatprep.subr.mxu0 0.0
          %1566 = vmatpush2.msra.mxu0 0.0
          %1567 = vmatprep.subr.mxu0 0.0
          %1568 = vmatpush2.msra.mxu0 0.0
          %1569 = vmatprep.subr.mxu0 0.0
          %1570 = vmatpush2.msra.mxu0 0.0
          %1571 = vmatprep.subr.mxu0 0.0
          %1572 = vmatpush2.msra.mxu0 0.0
          %1573 = vmatprep.subr.mxu0 0.0
          %1574 = vmatpush2.msra.mxu0 0.0
          %1575 = vmatprep.subr.mxu0 0.0
          %1576 = vmatpush2.msra.mxu0 0.0
          %1577 = vmatprep.subr.mxu0 0.0
          %1578 = vmatpush2.msra.mxu0 0.0
          %1579 = vmatprep.subr.mxu0 0.0
          %1580 = vmatpush2.msra.mxu0 0.0
          %1581 = vmatprep.subr.mxu0 0.0
          %1582 = vmatpush2.msra.mxu0 0.0
          %1583 = vmatprep.subr.mxu0 0.0
          %1584 = vmatpush2.msra.mxu0 0.0
          %1585 = vmatprep.subr.mxu0 0.0
          %1586 = vmatpush2.msra.mxu0 0.0
          %1587 = vmatprep.subr.mxu0 0.0
          %1588 = vmatpush2.msra.mxu0 0.0
          %1589 = vmatprep.subr.mxu0 0.0
          %1590 = vmatpush2.msra.mxu0 0.0
          %1591 = vmatprep.subr.mxu0 0.0
          %1592 = vmatpush2.msra.mxu0 0.0
          %1593 = vmatprep.subr.mxu0 0.0
          %1594 = vmatpush2.msra.mxu0 0.0
          %1595 = vmatprep.mubr.f32.mxu0 0.0
          %1596 = vmatmul.mubr.f32.gmra.mxu0 %v1419
          %v1597 = vpop.f32.mrf.mxu0
          %v1598 = vadd.f32 0.0, %v1597
          %v1599 = vpop.f32.mrf.mxu0
          %1600 = vmatprep.mubr.f32.mxu0 0.0
          %1601 = vmatmul.mubr.f32.gmra.mxu0 %v1422
          %v1602 = vpop.f32.mrf.mxu0
          %v1603 = vadd.f32 0.0, %v1602
          %v1604 = vpop.f32.mrf.mxu0
          %1605 = vmatprep.mubr.f32.mxu0 0.0
          %1606 = vmatmul.mubr.f32.gmra.mxu0 %v1425
          %v1607 = vpop.f32.mrf.mxu0
          %v1608 = vadd.f32 0.0, %v1607
          %v1609 = vpop.f32.mrf.mxu0
          %1610 = vmatprep.mubr.f32.mxu0 0.0
          %1611 = vmatmul.mubr.f32.gmra.mxu0 %v1428
          %v1612 = vpop.f32.mrf.mxu0
          %v1613 = vadd.f32 0.0, %v1612
          %v1614 = vpop.f32.mrf.mxu0
          %1615 = vmatprep.mubr.f32.mxu0 0.0
          %1616 = vmatmul.mubr.f32.gmra.mxu0 %v1431
          %v1617 = vpop.f32.mrf.mxu0
          %v1618 = vadd.f32 0.0, %v1617
          %v1619 = vpop.f32.mrf.mxu0
          %1620 = vmatprep.mubr.f32.mxu0 0.0
          %1621 = vmatmul.mubr.f32.gmra.mxu0 %v1434
          %v1622 = vpop.f32.mrf.mxu0
          %v1623 = vadd.f32 0.0, %v1622
          %v1624 = vpop.f32.mrf.mxu0
          %1625 = vdwg.mxu0
          %v1626 = vadd.f32 %v1503, %v1598
          %v1627 = vadd.f32 %v1508, %v1603
          %v1628 = vadd.f32 %v1513, %v1608
          %v1629 = vadd.f32 %v1518, %v1613
          %v1630 = vadd.f32 %v1523, %v1618
          %v1631 = vadd.f32 %v1528, %v1623
          %v1632 = vadd.f32 %v1626, %v1411
          %v1633 = vadd.f32 %v1627, %v1412
          %v1634 = vadd.f32 %v1628, %v1413
          %v1635 = vadd.f32 %v1629, %v1414
          %v1636 = vadd.f32 %v1630, %v1415
          %v1637 = vadd.f32 %v1631, %v1416
          %v1638 = vxor.u32 %v1632, 2147483648
          %v1639 = vxor.u32 %v1633, 2147483648
          %v1640 = vxor.u32 %v1634, 2147483648
          %v1641 = vxor.u32 %v1635, 2147483648
          %v1642 = vxor.u32 %v1636, 2147483648
          %v1643 = vxor.u32 %v1637, 2147483648
          %v1644 = vmul.f32 %v1638, 1.442695
          %v1645 = vpow.pop %v1644
          %v1646 = vmul.f32 %v1639, 1.442695
          %v1647 = vpow.pop %v1646
          %v1648 = vmul.f32 %v1640, 1.442695
          %v1649 = vpow.pop %v1648
          %v1650 = vmul.f32 %v1641, 1.442695
          %v1651 = vpow.pop %v1650
          %v1652 = vmul.f32 %v1642, 1.442695
          %v1653 = vpow.pop %v1652
          %v1654 = vmul.f32 %v1643, 1.442695
          %v1655 = vpow.pop %v1654
          %v1656 = vadd.f32 %v1645, 1.0
          %v1657 = vadd.f32 %v1647, 1.0
          %v1658 = vadd.f32 %v1649, 1.0
          %v1659 = vadd.f32 %v1651, 1.0
          %v1660 = vadd.f32 %v1653, 1.0
          %v1661 = vadd.f32 %v1655, 1.0
          %v1662 = vrcp.pop %v1656
          %v1663 = vmul.f32 1.0, %v1662
          %v1664 = vrcp.pop %v1657
          %v1665 = vmul.f32 1.0, %v1664
          %v1666 = vrcp.pop %v1658
          %v1667 = vmul.f32 1.0, %v1666
          %v1668 = vrcp.pop %v1659
          %v1669 = vmul.f32 1.0, %v1668
          %v1670 = vrcp.pop %v1660
          %v1671 = vmul.f32 1.0, %v1670
          %v1672 = vrcp.pop %v1661
          %v1673 = vmul.f32 1.0, %v1672
          %1674 = vst.msk [vmem:[%s480] sm:$0xff] %vm1329, %v1663
          %1675 = vst.msk [vmem:[%s480 + $0x8] sm:$0xff] %vm1329, %v1665
          %1676 = vst.msk [vmem:[%s480 + $0x10] sm:$0xff] %vm1329, %v1667
          %1677 = vst.msk [vmem:[%s480 + $0x18] sm:$0xff] %vm1329, %v1669
          %1678 = vst.msk [vmem:[%s480 + $0x20] sm:$0xff] %vm1329, %v1671
          %1679 = vst.msk [vmem:[%s480 + $0x28] sm:$0xff] %vm1329, %v1673
        $region68: #{tpu_custom_call.1} parent=55 // pred_fallthru
          _
        %s1680 = sand.u32 %s260, 1
        %s1681 = scalar_lea.sflag [#allocation6], %s1680
        %s1682 = sand.u32 %s260, 1
        %s1683 = smul.addr %s1682, 96
        %s1684 = scalar_lea.vmem [#allocation7], %s1683
        %p1685 = scmp.lt.s32.totalorder %s32, 1
        %s1686 = scalar_select %p1685, %s32, 1
        %s1687 = smul.addr %s1686, 6
        %s1688 = smul.addr %s1687, 8
        %s1689 = scalar_lea.vmem %s10, %s1688
        // Predicated region
        $region69: #{tpu_custom_call.1} parent=55 // pred_check
          %p1690 = pneg %p270
        $region70: #{tpu_custom_call.1} parent=55 // pred_check_branch
          %1692 = sbr.rel (%p1690) target = $region72
        $region71: #{tpu_custom_call.1} parent=55 // pred_region
          %s1693 = smul.u32 2, %s33
          %s1695 = ssub.s32 1536, 1536
          %1696 = vsyncadd %s1681, %s1695
          %s1697 = smul.addr %s32, 12
          %s1698 = sadd.s32 %s1693, %s1697
          %s1699 = smul.addr %s1698, 128
          %s1700 = scalar_lea.hbm %s9, %s1699
          %s1701 = sshll.u32 %s1684, 4
          %s1702 = int_to_ptr.vmem [resolvable:$true] %s1701
          %1707 = dma.vmem_to_hbm [thread:$0]  %s1702, 1536, %s1700, %s1681, 256, 256, 16
        $region72: #{tpu_custom_call.1} parent=55 // pred_fallthru
          _
        // Predicated region
        $region73: #{tpu_custom_call.1} parent=55 // pred_check
          %p1708 = pneg %p296
        $region74: #{tpu_custom_call.1} parent=55 // pred_check_branch
          %1710 = sbr.rel (%p1708) target = $region76
        $region75: #{tpu_custom_call.1} parent=55 // pred_region
          _
        $region76: #{tpu_custom_call.1} parent=55 // pred_fallthru
          _
      $region56: #{tpu_custom_call.1} parent=5 // pred_fallthru
        _
      %p1711 = scmp.le.s32.totalorder 2, %s23
      // Predicated region
      $region77: #{tpu_custom_call.1} parent=5 // pred_check
        %p1712 = pneg %p1711
      $region78: #{tpu_custom_call.1} parent=5 // pred_check_branch
        %1714 = sbr.rel (%p1712) target = $region80
      $region79: #{tpu_custom_call.1} parent=5 // pred_region
        %s1715 = ssub.s32 %s23, 2
        // Predicated region
        $region81: #{tpu_custom_call.1} parent=79 // pred_check
          %p1716 = pneg %p276
        $region82: #{tpu_custom_call.1} parent=79 // pred_check_branch
          %1718 = sbr.rel (%p1716) target = $region84
        $region83: #{tpu_custom_call.1} parent=79 // pred_region
          %s1719 = sand.u32 %s261, 1
          %s1720 = scalar_lea.sflag [#allocation6], %s1719
          %s1721 = sand.u32 %s261, 1
          %s1722 = smul.addr %s1721, 96
          %s1723 = scalar_lea.vmem [#allocation7], %s1722
          %1724 = dma.done %s1720, 1536
        $region84: #{tpu_custom_call.1} parent=79 // pred_fallthru
          _
        // Predicated region
        $region85: #{tpu_custom_call.1} parent=79 // pred_check
          %p1725 = pneg %p302
        $region86: #{tpu_custom_call.1} parent=79 // pred_check_branch
          %1727 = sbr.rel (%p1725) target = $region88
        $region87: #{tpu_custom_call.1} parent=79 // pred_region
          %p1728 = scmp.lt.s32.totalorder %s34, 1
          %s1729 = scalar_select %p1728, %s34, 1
          %s1730 = smul.addr %s1729, 6
          %s1731 = smul.addr %s1730, 8
          %s1732 = scalar_lea.vmem %s10, %s1731
        $region88: #{tpu_custom_call.1} parent=79 // pred_fallthru
          _
      $region80: #{tpu_custom_call.1} parent=5 // pred_fallthru
        _
    $region6: #{tpu_custom_call.1} parent=1 // loop_footer
      %s27 = sadd.s32 1, %s23
    $region7: #{tpu_custom_call.1} parent=1 // loop_footer_branch
      %22 = sbr.rel target = $region3
    $region8: #{tpu_custom_call.1} parent=1 // loop_exit
      _
    %1733 = vsyncpa [#allocation5], 1
    %s1734 = scalar_lea.sflag [#allocation5], 1
    %1735 = vsyncpa %s1734, 1
    %1736 = vsyncpa [#allocation6], 1
    %s1737 = scalar_lea.sflag [#allocation6], 1
    %1738 = vsyncpa %s1737, 1

</llo_original>
